<compile_context>
chip_gen: v7x
topology: tpu7x:2x2x1
jax: 0.10.0
libtpu: 0.0.40
codegen_flags: <defaults>
</compile_context>

<pallas_src>
import functools

import jax
import jax.numpy as jnp
import numpy as np
from jax.experimental import pallas as pl
from jax.experimental.pallas import tpu as pltpu

LANE = 128


def _round_up(x, m):
    return ((x + m - 1) // m) * m


# ------------------------------- Pallas kernel -------------------------------


def _node_embedding_kernel(x_ref,
                           w1, b1, w2, b2, w3, b3, w4, b4, w5, b5,
                           out_ref):
    """Fused MLP on one (tile_m, 128)-padded row tile. Weights are VMEM-resident."""
    cdt = w1.dtype                      # compute dtype (bf16 or f32)
    x = x_ref[...]                      # already in compute dtype
    x = jnp.maximum(jnp.dot(x, w1[...], preferred_element_type=jnp.float32) + b1[...], 0.0).astype(cdt)
    x = jnp.maximum(jnp.dot(x, w2[...], preferred_element_type=jnp.float32) + b2[...], 0.0).astype(cdt)
    x = jnp.maximum(jnp.dot(x, w3[...], preferred_element_type=jnp.float32) + b3[...], 0.0).astype(cdt)
    x = jnp.maximum(jnp.dot(x, w4[...], preferred_element_type=jnp.float32) + b4[...], 0.0).astype(cdt)
    y = jnp.dot(x, w5[...], preferred_element_type=jnp.float32) + b5[...]
    out_ref[...] = jnp.tanh(y)          # lane-dense (padded to 128) f32 store


def _node_embedding_pallas(x_pad, padded_params, out_dim_pad, tile_m):
    n_pad, d_pad = x_pad.shape
    grid = (n_pad // tile_m,)

    weight_args = []
    # Activation tile: one (tile_m, d_pad) block per grid step (pipelined DMA).
    in_specs = [pl.BlockSpec((tile_m, d_pad), lambda i: (i, 0))]
    for w, b in padded_params:
        weight_args += [w, b]
        # Constant index_map -> block index never changes -> weights stay
        # VMEM-resident across the whole grid (no redundant weight refetch).
        in_specs.append(pl.BlockSpec(w.shape, lambda i: (0, 0)))
        in_specs.append(pl.BlockSpec(b.shape, lambda i: (0, 0)))

    return pl.pallas_call(
        _node_embedding_kernel,
        out_shape=jax.ShapeDtypeStruct((n_pad, out_dim_pad), jnp.float32),
        grid_spec=pltpu.PrefetchScalarGridSpec(
            num_scalar_prefetch=0,
            grid=grid,
            in_specs=in_specs,
            out_specs=pl.BlockSpec((tile_m, out_dim_pad), lambda i: (i, 0)),
        ),
        compiler_params=pltpu.CompilerParams(
            # Rows are independent -> parallel axis (shards across v7x's 2 TCs).
            dimension_semantics=("parallel",),
        ),
    )(x_pad, *weight_args)


# ------------------------------ forward wrapper ------------------------------


@functools.partial(jax.jit, static_argnames=("out_size", "tile_m", "compute_dtype"))
def node_embedding_forward(x, params, out_size, *, tile_m=128,
                           compute_dtype=jnp.bfloat16):
    """Pallas forward of NodeEmbedding. x: (N, input_size) -> (N, out_size)."""
    n, d_in = x.shape
    d_in_pad = _round_up(d_in, LANE)
    n_pad = _round_up(max(n, tile_m), tile_m)

    # Zero-pad rows (to a tile multiple) and feature lanes (to 128 multiples).
    x_pad = jnp.zeros((n_pad, d_in_pad), compute_dtype)
    x_pad = x_pad.at[:n, :d_in].set(x.astype(compute_dtype))

    # Zero-pad weights/biases to 128-lane multiples.  Padded input lanes hit
    # zero weight rows and padded output lanes get zero weight cols + zero bias,
    # so ReLU keeps them exactly zero through the stack (exact semantics).
    padded_params = []
    prev_pad = d_in_pad
    for (w, b) in params:
        din, dout = w.shape
        dout_pad = _round_up(dout, LANE)
        w_pad = jnp.zeros((prev_pad, dout_pad), jnp.float32).at[:din, :dout].set(w)
        b_pad = jnp.zeros((1, dout_pad), jnp.float32).at[:, :dout].set(b)
        padded_params.append((w_pad.astype(compute_dtype), b_pad))  # bias stays f32
        prev_pad = dout_pad
    out_dim_pad = prev_pad

    y_pad = _node_embedding_pallas(x_pad, padded_params, out_dim_pad, tile_m)
    # Final-layer padded lanes are tanh(0) = 0; slice them (and padded rows) off.
    return y_pad[:n, :out_size]


# --------------------------- params + numpy reference ------------------------


def make_params(key, input_size, output_size):
    """PyTorch-style nn.Linear init: uniform(+-1/sqrt(fan_in)), weight as (in, out)."""
    dims = [input_size, 100, 100, 50, 10, output_size]
    keys = jax.random.split(key, len(dims) - 1)
    params = []
    for i in range(len(dims) - 1):
        kw, kb = jax.random.split(keys[i])
        bound = 1.0 / np.sqrt(dims[i])
        w = jax.random.uniform(kw, (dims[i], dims[i + 1]), jnp.float32, -bound, bound)
        b = jax.random.uniform(kb, (1, dims[i + 1]), jnp.float32, -bound, bound)
        params.append((w, b))
    return params


def node_embedding_reference_np(x, params):
    """Exact float64 host reference of the PyTorch forward."""
    h = np.asarray(x, np.float64)
    for i, (w, b) in enumerate(params):
        h = h @ np.asarray(w, np.float64) + np.asarray(b, np.float64)
        h = np.maximum(h, 0.0) if i < len(params) - 1 else np.tanh(h)
    return h.astype(np.float32)


# ----------------------------------- main ------------------------------------


if __name__ == "__main__":
    N, IN_SIZE, OUT_SIZE = 512, 30, 8          # 512 nodes, 30 features -> 8-dim embedding

    key = jax.random.PRNGKey(0)
    kx, kp = jax.random.split(key)
    x = jax.random.normal(kx, (N, IN_SIZE), jnp.float32)
    params = make_params(kp, IN_SIZE, OUT_SIZE)

    ref = node_embedding_reference_np(
        np.asarray(x), [(np.asarray(w), np.asarray(b)) for w, b in params])

    # f32 compute path (MXU default precision may use bf16 passes -> modest tol).
    y_f32 = jax.block_until_ready(
        node_embedding_forward(x, params, OUT_SIZE, tile_m=128,
                               compute_dtype=jnp.float32))
    np.testing.assert_allclose(np.asarray(y_f32), ref, rtol=2e-2, atol=2e-2)

    # bf16 compute path (recommended on v6e/v7x); output is tanh-bounded.
    y_bf16 = jax.block_until_ready(
        node_embedding_forward(x, params, OUT_SIZE, tile_m=128,
                               compute_dtype=jnp.bfloat16))
    np.testing.assert_allclose(np.asarray(y_bf16), ref, rtol=5e-2, atol=5e-2)

    print("KERNEL_OK")
</pallas_src>

<mosaic_0001>
module attributes {stable_mosaic.version = 11 : i64} {
  func.func @_node_embedding_kernel(%arg0: i32, %arg1: memref<128x128xf32, #tpu.memory_space<vmem>>, %arg2: memref<128x128xf32, #tpu.memory_space<vmem>>, %arg3: memref<1x128xf32, #tpu.memory_space<vmem>>, %arg4: memref<128x128xf32, #tpu.memory_space<vmem>>, %arg5: memref<1x128xf32, #tpu.memory_space<vmem>>, %arg6: memref<128x128xf32, #tpu.memory_space<vmem>>, %arg7: memref<1x128xf32, #tpu.memory_space<vmem>>, %arg8: memref<128x128xf32, #tpu.memory_space<vmem>>, %arg9: memref<1x128xf32, #tpu.memory_space<vmem>>, %arg10: memref<128x128xf32, #tpu.memory_space<vmem>>, %arg11: memref<1x128xf32, #tpu.memory_space<vmem>>, %arg12: memref<128x128xf32, #tpu.memory_space<vmem>>) attributes {dimension_semantics = [#tpu.dimension_semantics<parallel>], iteration_bounds = array<i64: 4>, scalar_prefetch = 0 : i64, scratch_operands = 0 : i64, tpu.core_type = #tpu.core_type<tc>, window_params = [{transform_indices = @transform_0, window_bounds = array<i64: 128, 128>}, {pipeline_mode = #tpu.pipeline_mode<synchronous>, transform_indices = @transform_1, window_bounds = array<i64: 128, 128>}, {pipeline_mode = #tpu.pipeline_mode<synchronous>, transform_indices = @transform_2, window_bounds = array<i64: 1, 128>}, {pipeline_mode = #tpu.pipeline_mode<synchronous>, transform_indices = @transform_3, window_bounds = array<i64: 128, 128>}, {pipeline_mode = #tpu.pipeline_mode<synchronous>, transform_indices = @transform_4, window_bounds = array<i64: 1, 128>}, {pipeline_mode = #tpu.pipeline_mode<synchronous>, transform_indices = @transform_5, window_bounds = array<i64: 128, 128>}, {pipeline_mode = #tpu.pipeline_mode<synchronous>, transform_indices = @transform_6, window_bounds = array<i64: 1, 128>}, {pipeline_mode = #tpu.pipeline_mode<synchronous>, transform_indices = @transform_7, window_bounds = array<i64: 128, 128>}, {pipeline_mode = #tpu.pipeline_mode<synchronous>, transform_indices = @transform_8, window_bounds = array<i64: 1, 128>}, {pipeline_mode = #tpu.pipeline_mode<synchronous>, transform_indices = @transform_9, window_bounds = array<i64: 128, 128>}, {pipeline_mode = #tpu.pipeline_mode<synchronous>, transform_indices = @transform_10, window_bounds = array<i64: 1, 128>}, {transform_indices = @transform_11, window_bounds = array<i64: 128, 128>}]} {
    %c0 = arith.constant 0 : index
    %c0_0 = arith.constant 0 : index
    %0 = vector.load %arg1[%c0, %c0_0] : memref<128x128xf32, #tpu.memory_space<vmem>>, vector<128x128xf32>
    %c0_1 = arith.constant 0 : index
    %c0_2 = arith.constant 0 : index
    %1 = vector.load %arg2[%c0_1, %c0_2] : memref<128x128xf32, #tpu.memory_space<vmem>>, vector<128x128xf32>
    %cst = arith.constant dense<0.000000e+00> : vector<128x128xf32>
    %2 = tpu.matmul %0, %1, %cst {dimension_numbers = #tpu.dot_dimension_numbers<[1], [0], [0], [1], [0, 0, 1, 1], [], []>} : vector<128x128xf32>, vector<128x128xf32>, vector<128x128xf32> -> vector<128x128xf32>
    %c0_3 = arith.constant 0 : index
    %c0_4 = arith.constant 0 : index
    %3 = vector.load %arg3[%c0_3, %c0_4] : memref<1x128xf32, #tpu.memory_space<vmem>>, vector<1x128xf32>
    %4 = vector.broadcast %3 : vector<1x128xf32> to vector<128x128xf32>
    %5 = arith.addf %2, %4 : vector<128x128xf32>
    %cst_5 = arith.constant 0.000000e+00 : f32
    %6 = vector.broadcast %cst_5 : f32 to vector<128x128xf32>
    %7 = arith.maximumf %5, %6 : vector<128x128xf32>
    %c0_6 = arith.constant 0 : index
    %c0_7 = arith.constant 0 : index
    %8 = vector.load %arg4[%c0_6, %c0_7] : memref<128x128xf32, #tpu.memory_space<vmem>>, vector<128x128xf32>
    %cst_8 = arith.constant dense<0.000000e+00> : vector<128x128xf32>
    %9 = tpu.matmul %7, %8, %cst_8 {dimension_numbers = #tpu.dot_dimension_numbers<[1], [0], [0], [1], [0, 0, 1, 1], [], []>} : vector<128x128xf32>, vector<128x128xf32>, vector<128x128xf32> -> vector<128x128xf32>
    %c0_9 = arith.constant 0 : index
    %c0_10 = arith.constant 0 : index
    %10 = vector.load %arg5[%c0_9, %c0_10] : memref<1x128xf32, #tpu.memory_space<vmem>>, vector<1x128xf32>
    %11 = vector.broadcast %10 : vector<1x128xf32> to vector<128x128xf32>
    %12 = arith.addf %9, %11 : vector<128x128xf32>
    %cst_11 = arith.constant 0.000000e+00 : f32
    %13 = vector.broadcast %cst_11 : f32 to vector<128x128xf32>
    %14 = arith.maximumf %12, %13 : vector<128x128xf32>
    %c0_12 = arith.constant 0 : index
    %c0_13 = arith.constant 0 : index
    %15 = vector.load %arg6[%c0_12, %c0_13] : memref<128x128xf32, #tpu.memory_space<vmem>>, vector<128x128xf32>
    %cst_14 = arith.constant dense<0.000000e+00> : vector<128x128xf32>
    %16 = tpu.matmul %14, %15, %cst_14 {dimension_numbers = #tpu.dot_dimension_numbers<[1], [0], [0], [1], [0, 0, 1, 1], [], []>} : vector<128x128xf32>, vector<128x128xf32>, vector<128x128xf32> -> vector<128x128xf32>
    %c0_15 = arith.constant 0 : index
    %c0_16 = arith.constant 0 : index
    %17 = vector.load %arg7[%c0_15, %c0_16] : memref<1x128xf32, #tpu.memory_space<vmem>>, vector<1x128xf32>
    %18 = vector.broadcast %17 : vector<1x128xf32> to vector<128x128xf32>
    %19 = arith.addf %16, %18 : vector<128x128xf32>
    %cst_17 = arith.constant 0.000000e+00 : f32
    %20 = vector.broadcast %cst_17 : f32 to vector<128x128xf32>
    %21 = arith.maximumf %19, %20 : vector<128x128xf32>
    %c0_18 = arith.constant 0 : index
    %c0_19 = arith.constant 0 : index
    %22 = vector.load %arg8[%c0_18, %c0_19] : memref<128x128xf32, #tpu.memory_space<vmem>>, vector<128x128xf32>
    %cst_20 = arith.constant dense<0.000000e+00> : vector<128x128xf32>
    %23 = tpu.matmul %21, %22, %cst_20 {dimension_numbers = #tpu.dot_dimension_numbers<[1], [0], [0], [1], [0, 0, 1, 1], [], []>} : vector<128x128xf32>, vector<128x128xf32>, vector<128x128xf32> -> vector<128x128xf32>
    %c0_21 = arith.constant 0 : index
    %c0_22 = arith.constant 0 : index
    %24 = vector.load %arg9[%c0_21, %c0_22] : memref<1x128xf32, #tpu.memory_space<vmem>>, vector<1x128xf32>
    %25 = vector.broadcast %24 : vector<1x128xf32> to vector<128x128xf32>
    %26 = arith.addf %23, %25 : vector<128x128xf32>
    %cst_23 = arith.constant 0.000000e+00 : f32
    %27 = vector.broadcast %cst_23 : f32 to vector<128x128xf32>
    %28 = arith.maximumf %26, %27 : vector<128x128xf32>
    %c0_24 = arith.constant 0 : index
    %c0_25 = arith.constant 0 : index
    %29 = vector.load %arg10[%c0_24, %c0_25] : memref<128x128xf32, #tpu.memory_space<vmem>>, vector<128x128xf32>
    %cst_26 = arith.constant dense<0.000000e+00> : vector<128x128xf32>
    %30 = tpu.matmul %28, %29, %cst_26 {dimension_numbers = #tpu.dot_dimension_numbers<[1], [0], [0], [1], [0, 0, 1, 1], [], []>} : vector<128x128xf32>, vector<128x128xf32>, vector<128x128xf32> -> vector<128x128xf32>
    %c0_27 = arith.constant 0 : index
    %c0_28 = arith.constant 0 : index
    %31 = vector.load %arg11[%c0_27, %c0_28] : memref<1x128xf32, #tpu.memory_space<vmem>>, vector<1x128xf32>
    %32 = vector.broadcast %31 : vector<1x128xf32> to vector<128x128xf32>
    %33 = arith.addf %30, %32 : vector<128x128xf32>
    %34 = math.tanh %33 : vector<128x128xf32>
    %c0_29 = arith.constant 0 : index
    %c0_30 = arith.constant 0 : index
    %35 = vector.load %arg12[%c0_29, %c0_30] : memref<128x128xf32, #tpu.memory_space<vmem>>, vector<128x128xf32>
    tpu.vector_store %arg12[%c0_29, %c0_30], %34 {strides = array<i32>} : memref<128x128xf32, #tpu.memory_space<vmem>>, vector<128x128xf32>,
    return
  }
  func.func @transform_0(%arg0: i32) -> (i32, i32) {
    %c0_i32 = arith.constant 0 : i32
    %c0_i32_0 = arith.constant 0 : i32
    return %arg0, %c0_i32 : i32, i32
  }
  func.func @transform_1(%arg0: i32) -> (i32, i32) {
    %c0_i32 = arith.constant 0 : i32
    %c0_i32_0 = arith.constant 0 : i32
    %c0_i32_1 = arith.constant 0 : i32
    return %c0_i32, %c0_i32_0 : i32, i32
  }
  func.func @transform_2(%arg0: i32) -> (i32, i32) {
    %c0_i32 = arith.constant 0 : i32
    %c0_i32_0 = arith.constant 0 : i32
    %c0_i32_1 = arith.constant 0 : i32
    return %c0_i32, %c0_i32_0 : i32, i32
  }
  func.func @transform_3(%arg0: i32) -> (i32, i32) {
    %c0_i32 = arith.constant 0 : i32
    %c0_i32_0 = arith.constant 0 : i32
    %c0_i32_1 = arith.constant 0 : i32
    return %c0_i32, %c0_i32_0 : i32, i32
  }
  func.func @transform_4(%arg0: i32) -> (i32, i32) {
    %c0_i32 = arith.constant 0 : i32
    %c0_i32_0 = arith.constant 0 : i32
    %c0_i32_1 = arith.constant 0 : i32
    return %c0_i32, %c0_i32_0 : i32, i32
  }
  func.func @transform_5(%arg0: i32) -> (i32, i32) {
    %c0_i32 = arith.constant 0 : i32
    %c0_i32_0 = arith.constant 0 : i32
    %c0_i32_1 = arith.constant 0 : i32
    return %c0_i32, %c0_i32_0 : i32, i32
  }
  func.func @transform_6(%arg0: i32) -> (i32, i32) {
    %c0_i32 = arith.constant 0 : i32
    %c0_i32_0 = arith.constant 0 : i32
    %c0_i32_1 = arith.constant 0 : i32
    return %c0_i32, %c0_i32_0 : i32, i32
  }
  func.func @transform_7(%arg0: i32) -> (i32, i32) {
    %c0_i32 = arith.constant 0 : i32
    %c0_i32_0 = arith.constant 0 : i32
    %c0_i32_1 = arith.constant 0 : i32
    return %c0_i32, %c0_i32_0 : i32, i32
  }
  func.func @transform_8(%arg0: i32) -> (i32, i32) {
    %c0_i32 = arith.constant 0 : i32
    %c0_i32_0 = arith.constant 0 : i32
    %c0_i32_1 = arith.constant 0 : i32
    return %c0_i32, %c0_i32_0 : i32, i32
  }
  func.func @transform_9(%arg0: i32) -> (i32, i32) {
    %c0_i32 = arith.constant 0 : i32
    %c0_i32_0 = arith.constant 0 : i32
    %c0_i32_1 = arith.constant 0 : i32
    return %c0_i32, %c0_i32_0 : i32, i32
  }
  func.func @transform_10(%arg0: i32) -> (i32, i32) {
    %c0_i32 = arith.constant 0 : i32
    %c0_i32_0 = arith.constant 0 : i32
    %c0_i32_1 = arith.constant 0 : i32
    return %c0_i32, %c0_i32_0 : i32, i32
  }
  func.func @transform_11(%arg0: i32) -> (i32, i32) {
    %c0_i32 = arith.constant 0 : i32
    %c0_i32_0 = arith.constant 0 : i32
    return %arg0, %c0_i32 : i32, i32
  }
}

</mosaic_0001>

<llo_original>
// kernel: node_embedding_forward.1
$region0: #{node_embedding_forward.1}
  #allocation0 [shape = 'u32[]', space=smem, size = 0x4, offset = 0x4, fixed_abs, tag = 'smem constant byte address 0x4 - core index']
  #allocation1 [shape = 'u32[144,128]{1,0:T(1,128)}', space=vmem, size = 0x12000, scoped, tag = 'internal scratch']
  %s0 = inlined_call_operand.vmem [shape: f32[512,128], index: 0, kind: input, shape index: {}]
  %s1 = inlined_call_operand.vmem [shape: f32[128,128], index: 1, kind: input, shape index: {}]
  %s2 = inlined_call_operand.vmem [shape: f32[1,128], index: 2, kind: input, shape index: {}]
  %s3 = inlined_call_operand.vmem [shape: f32[128,128], index: 3, kind: input, shape index: {}]
  %s4 = inlined_call_operand.vmem [shape: f32[1,128], index: 4, kind: input, shape index: {}]
  %s5 = inlined_call_operand.vmem [shape: f32[128,128], index: 5, kind: input, shape index: {}]
  %s6 = inlined_call_operand.vmem [shape: f32[1,128], index: 6, kind: input, shape index: {}]
  %s7 = inlined_call_operand.vmem [shape: f32[128,128], index: 7, kind: input, shape index: {}]
  %s8 = inlined_call_operand.vmem [shape: f32[1,128], index: 8, kind: input, shape index: {}]
  %s9 = inlined_call_operand.vmem [shape: f32[128,128], index: 9, kind: input, shape index: {}]
  %s10 = inlined_call_operand.vmem [shape: f32[1,128], index: 10, kind: input, shape index: {}]
  %s11 = inlined_call_operand.vmem [shape: f32[512,128], index: 11, kind: output, shape index: {}]
  %s12 = sld [smem:[#allocation0]]
  $region77: #{node_embedding_forward.1} parent=0
    _
  %s14 = ssub.s32 1, %s12
  %s15 = scalar_select 0, %s14, %s12
  loop: start=0, step=1, limit=6
  $region2: #{node_embedding_forward.1} parent=0 // loop_pre_header
    _
  $region3: #{node_embedding_forward.1} parent=0 // loop_header
    %s17 = sphi 0, %s21
    %p18 = scmp.ge.s32.totalorder %s17, 6
    %s27 = sphi 0, %s29
    %s30 = sphi 0, %s27
    %s31 = sphi 0, %s30
    %s47 = sphi 0, %s31
    %s51 = sphi 0, %s51
    %s53 = sphi 0, %s51
    %s54 = sphi 0, %s53
    %s68 = sphi 0, %s54
    %s72 = sphi 0, %s72
    %s74 = sphi 0, %s72
    %s75 = sphi 0, %s74
    %s89 = sphi 0, %s75
    %s93 = sphi 0, %s93
    %s95 = sphi 0, %s93
    %s96 = sphi 0, %s95
    %s110 = sphi 0, %s96
    %s114 = sphi 0, %s114
    %s116 = sphi 0, %s114
    %s117 = sphi 0, %s116
    %s131 = sphi 0, %s117
    %s135 = sphi 0, %s135
    %s137 = sphi 0, %s135
    %s138 = sphi 0, %s137
    %s152 = sphi 0, %s138
    %s156 = sphi 0, %s156
    %s158 = sphi 0, %s156
    %s159 = sphi 0, %s158
    %s173 = sphi 0, %s159
    %s177 = sphi 0, %s177
    %s179 = sphi 0, %s177
    %s180 = sphi 0, %s179
    %s194 = sphi 0, %s180
    %s198 = sphi 0, %s198
    %s200 = sphi 0, %s198
    %s201 = sphi 0, %s200
    %s215 = sphi 0, %s201
    %s219 = sphi 0, %s219
    %s221 = sphi 0, %s219
    %s222 = sphi 0, %s221
    %s236 = sphi 0, %s222
    %s240 = sphi 0, %s240
    %s242 = sphi 0, %s240
    %s243 = sphi 0, %s242
    %s257 = sphi 0, %s243
    %s263 = sphi 0, %s265
    %s266 = sphi 0, %s263
    %s267 = sphi 0, %s266
    %s283 = sphi 0, %s267
  $region4: #{node_embedding_forward.1} parent=0 // loop_header_branch
    %20 = sbr.rel (%p18) target = $region8
  $region5: #{node_embedding_forward.1} parent=0 // loop_body
    %s22 = ssub.s32 %s17, 1
    %s23 = ssub.s32 %s17, 2
    %s24 = sadd.s32 %s17, 1
    %s25 = ssub.s32 %s17, %s24
    %p26 = scmp.eq.s32.totalorder %s25, 0
    %s28 = sadd.s32 %s27, 1
    %s29 = scalar_select %p26, %s27, %s28
    %p32 = pneg %p26
    %p33 = scmp.eq.s32.totalorder %s17, 3
    %p34 = por %p32, %p33
    %p35 = scmp.ne.s32.totalorder %s27, %s30
    %p36 = scmp.eq.s32.totalorder %s17, 0
    %p37 = por %p35, %p36
    %p38 = scmp.ne.s32.totalorder %s27, %s30
    %p39 = scmp.eq.s32.totalorder %s22, 3
    %p40 = por %p38, %p39
    %p41 = scmp.ne.s32.totalorder %s30, %s31
    %p42 = scmp.eq.s32.totalorder %s22, 0
    %p43 = por %p41, %p42
    %p44 = scmp.ne.s32.totalorder %s30, %s31
    %p45 = scmp.eq.s32.totalorder %s23, 3
    %p46 = por %p44, %p45
    %p48 = scmp.ne.s32.totalorder %s31, %s47
    %p49 = scmp.eq.s32.totalorder %s23, 0
    %p50 = por %p48, %p49
    %s52 = sadd.s32 %s51, 1
    %p55 = scmp.eq.s32.totalorder %s17, 3
    %p56 = scmp.ne.s32.totalorder %s51, %s53
    %p57 = scmp.eq.s32.totalorder %s17, 0
    %p58 = por %p56, %p57
    %p59 = scmp.ne.s32.totalorder %s51, %s53
    %p60 = scmp.eq.s32.totalorder %s22, 3
    %p61 = por %p59, %p60
    %p62 = scmp.ne.s32.totalorder %s53, %s54
    %p63 = scmp.eq.s32.totalorder %s22, 0
    %p64 = por %p62, %p63
    %p65 = scmp.ne.s32.totalorder %s53, %s54
    %p66 = scmp.eq.s32.totalorder %s23, 3
    %p67 = por %p65, %p66
    %p69 = scmp.ne.s32.totalorder %s54, %s68
    %p70 = scmp.eq.s32.totalorder %s23, 0
    %p71 = por %p69, %p70
    %s73 = sadd.s32 %s72, 1
    %p76 = scmp.eq.s32.totalorder %s17, 3
    %p77 = scmp.ne.s32.totalorder %s72, %s74
    %p78 = scmp.eq.s32.totalorder %s17, 0
    %p79 = por %p77, %p78
    %p80 = scmp.ne.s32.totalorder %s72, %s74
    %p81 = scmp.eq.s32.totalorder %s22, 3
    %p82 = por %p80, %p81
    %p83 = scmp.ne.s32.totalorder %s74, %s75
    %p84 = scmp.eq.s32.totalorder %s22, 0
    %p85 = por %p83, %p84
    %p86 = scmp.ne.s32.totalorder %s74, %s75
    %p87 = scmp.eq.s32.totalorder %s23, 3
    %p88 = por %p86, %p87
    %p90 = scmp.ne.s32.totalorder %s75, %s89
    %p91 = scmp.eq.s32.totalorder %s23, 0
    %p92 = por %p90, %p91
    %s94 = sadd.s32 %s93, 1
    %p97 = scmp.eq.s32.totalorder %s17, 3
    %p98 = scmp.ne.s32.totalorder %s93, %s95
    %p99 = scmp.eq.s32.totalorder %s17, 0
    %p100 = por %p98, %p99
    %p101 = scmp.ne.s32.totalorder %s93, %s95
    %p102 = scmp.eq.s32.totalorder %s22, 3
    %p103 = por %p101, %p102
    %p104 = scmp.ne.s32.totalorder %s95, %s96
    %p105 = scmp.eq.s32.totalorder %s22, 0
    %p106 = por %p104, %p105
    %p107 = scmp.ne.s32.totalorder %s95, %s96
    %p108 = scmp.eq.s32.totalorder %s23, 3
    %p109 = por %p107, %p108
    %p111 = scmp.ne.s32.totalorder %s96, %s110
    %p112 = scmp.eq.s32.totalorder %s23, 0
    %p113 = por %p111, %p112
    %s115 = sadd.s32 %s114, 1
    %p118 = scmp.eq.s32.totalorder %s17, 3
    %p119 = scmp.ne.s32.totalorder %s114, %s116
    %p120 = scmp.eq.s32.totalorder %s17, 0
    %p121 = por %p119, %p120
    %p122 = scmp.ne.s32.totalorder %s114, %s116
    %p123 = scmp.eq.s32.totalorder %s22, 3
    %p124 = por %p122, %p123
    %p125 = scmp.ne.s32.totalorder %s116, %s117
    %p126 = scmp.eq.s32.totalorder %s22, 0
    %p127 = por %p125, %p126
    %p128 = scmp.ne.s32.totalorder %s116, %s117
    %p129 = scmp.eq.s32.totalorder %s23, 3
    %p130 = por %p128, %p129
    %p132 = scmp.ne.s32.totalorder %s117, %s131
    %p133 = scmp.eq.s32.totalorder %s23, 0
    %p134 = por %p132, %p133
    %s136 = sadd.s32 %s135, 1
    %p139 = scmp.eq.s32.totalorder %s17, 3
    %p140 = scmp.ne.s32.totalorder %s135, %s137
    %p141 = scmp.eq.s32.totalorder %s17, 0
    %p142 = por %p140, %p141
    %p143 = scmp.ne.s32.totalorder %s135, %s137
    %p144 = scmp.eq.s32.totalorder %s22, 3
    %p145 = por %p143, %p144
    %p146 = scmp.ne.s32.totalorder %s137, %s138
    %p147 = scmp.eq.s32.totalorder %s22, 0
    %p148 = por %p146, %p147
    %p149 = scmp.ne.s32.totalorder %s137, %s138
    %p150 = scmp.eq.s32.totalorder %s23, 3
    %p151 = por %p149, %p150
    %p153 = scmp.ne.s32.totalorder %s138, %s152
    %p154 = scmp.eq.s32.totalorder %s23, 0
    %p155 = por %p153, %p154
    %s157 = sadd.s32 %s156, 1
    %p160 = scmp.eq.s32.totalorder %s17, 3
    %p161 = scmp.ne.s32.totalorder %s156, %s158
    %p162 = scmp.eq.s32.totalorder %s17, 0
    %p163 = por %p161, %p162
    %p164 = scmp.ne.s32.totalorder %s156, %s158
    %p165 = scmp.eq.s32.totalorder %s22, 3
    %p166 = por %p164, %p165
    %p167 = scmp.ne.s32.totalorder %s158, %s159
    %p168 = scmp.eq.s32.totalorder %s22, 0
    %p169 = por %p167, %p168
    %p170 = scmp.ne.s32.totalorder %s158, %s159
    %p171 = scmp.eq.s32.totalorder %s23, 3
    %p172 = por %p170, %p171
    %p174 = scmp.ne.s32.totalorder %s159, %s173
    %p175 = scmp.eq.s32.totalorder %s23, 0
    %p176 = por %p174, %p175
    %s178 = sadd.s32 %s177, 1
    %p181 = scmp.eq.s32.totalorder %s17, 3
    %p182 = scmp.ne.s32.totalorder %s177, %s179
    %p183 = scmp.eq.s32.totalorder %s17, 0
    %p184 = por %p182, %p183
    %p185 = scmp.ne.s32.totalorder %s177, %s179
    %p186 = scmp.eq.s32.totalorder %s22, 3
    %p187 = por %p185, %p186
    %p188 = scmp.ne.s32.totalorder %s179, %s180
    %p189 = scmp.eq.s32.totalorder %s22, 0
    %p190 = por %p188, %p189
    %p191 = scmp.ne.s32.totalorder %s179, %s180
    %p192 = scmp.eq.s32.totalorder %s23, 3
    %p193 = por %p191, %p192
    %p195 = scmp.ne.s32.totalorder %s180, %s194
    %p196 = scmp.eq.s32.totalorder %s23, 0
    %p197 = por %p195, %p196
    %s199 = sadd.s32 %s198, 1
    %p202 = scmp.eq.s32.totalorder %s17, 3
    %p203 = scmp.ne.s32.totalorder %s198, %s200
    %p204 = scmp.eq.s32.totalorder %s17, 0
    %p205 = por %p203, %p204
    %p206 = scmp.ne.s32.totalorder %s198, %s200
    %p207 = scmp.eq.s32.totalorder %s22, 3
    %p208 = por %p206, %p207
    %p209 = scmp.ne.s32.totalorder %s200, %s201
    %p210 = scmp.eq.s32.totalorder %s22, 0
    %p211 = por %p209, %p210
    %p212 = scmp.ne.s32.totalorder %s200, %s201
    %p213 = scmp.eq.s32.totalorder %s23, 3
    %p214 = por %p212, %p213
    %p216 = scmp.ne.s32.totalorder %s201, %s215
    %p217 = scmp.eq.s32.totalorder %s23, 0
    %p218 = por %p216, %p217
    %s220 = sadd.s32 %s219, 1
    %p223 = scmp.eq.s32.totalorder %s17, 3
    %p224 = scmp.ne.s32.totalorder %s219, %s221
    %p225 = scmp.eq.s32.totalorder %s17, 0
    %p226 = por %p224, %p225
    %p227 = scmp.ne.s32.totalorder %s219, %s221
    %p228 = scmp.eq.s32.totalorder %s22, 3
    %p229 = por %p227, %p228
    %p230 = scmp.ne.s32.totalorder %s221, %s222
    %p231 = scmp.eq.s32.totalorder %s22, 0
    %p232 = por %p230, %p231
    %p233 = scmp.ne.s32.totalorder %s221, %s222
    %p234 = scmp.eq.s32.totalorder %s23, 3
    %p235 = por %p233, %p234
    %p237 = scmp.ne.s32.totalorder %s222, %s236
    %p238 = scmp.eq.s32.totalorder %s23, 0
    %p239 = por %p237, %p238
    %s241 = sadd.s32 %s240, 1
    %p244 = scmp.eq.s32.totalorder %s17, 3
    %p245 = scmp.ne.s32.totalorder %s240, %s242
    %p246 = scmp.eq.s32.totalorder %s17, 0
    %p247 = por %p245, %p246
    %p248 = scmp.ne.s32.totalorder %s240, %s242
    %p249 = scmp.eq.s32.totalorder %s22, 3
    %p250 = por %p248, %p249
    %p251 = scmp.ne.s32.totalorder %s242, %s243
    %p252 = scmp.eq.s32.totalorder %s22, 0
    %p253 = por %p251, %p252
    %p254 = scmp.ne.s32.totalorder %s242, %s243
    %p255 = scmp.eq.s32.totalorder %s23, 3
    %p256 = por %p254, %p255
    %p258 = scmp.ne.s32.totalorder %s243, %s257
    %p259 = scmp.eq.s32.totalorder %s23, 0
    %p260 = por %p258, %p259
    %s261 = ssub.s32 %s17, %s24
    %p262 = scmp.eq.s32.totalorder %s261, 0
    %s264 = sadd.s32 %s263, 1
    %s265 = scalar_select %p262, %s263, %s264
    %p268 = pneg %p262
    %p269 = scmp.eq.s32.totalorder %s17, 3
    %p270 = por %p268, %p269
    %p271 = scmp.ne.s32.totalorder %s263, %s266
    %p272 = scmp.eq.s32.totalorder %s17, 0
    %p273 = por %p271, %p272
    %p274 = scmp.ne.s32.totalorder %s263, %s266
    %p275 = scmp.eq.s32.totalorder %s22, 3
    %p276 = por %p274, %p275
    %p277 = scmp.ne.s32.totalorder %s266, %s267
    %p278 = scmp.eq.s32.totalorder %s22, 0
    %p279 = por %p277, %p278
    %p280 = scmp.ne.s32.totalorder %s266, %s267
    %p281 = scmp.eq.s32.totalorder %s23, 3
    %p282 = por %p280, %p281
    %p284 = scmp.ne.s32.totalorder %s267, %s283
    %p285 = scmp.eq.s32.totalorder %s23, 0
    %p286 = por %p284, %p285
    %p287 = scmp.le.s32.totalorder 1, %s17
    %p288 = scmp.lt.s32.totalorder %s17, 5
    %p289 = pnand %p287, %p288
    %p290 = pneg %p289
    // Predicated region
    $region9: #{node_embedding_forward.1} parent=5 // pred_check
      _
    $region10: #{node_embedding_forward.1} parent=5 // pred_check_branch
      %292 = sbr.rel (%p289) target = $region12
    $region11: #{node_embedding_forward.1} parent=5 // pred_region
      %s293 = ssub.s32 %s17, 1
      // Predicated region
      $region13: #{node_embedding_forward.1} parent=11 // pred_check
        %p294 = pneg %p64
      $region14: #{node_embedding_forward.1} parent=11 // pred_check_branch
        %296 = sbr.rel (%p294) target = $region16
      $region15: #{node_embedding_forward.1} parent=11 // pred_region
        _
      $region16: #{node_embedding_forward.1} parent=11 // pred_fallthru
        _
      // Predicated region
      $region17: #{node_embedding_forward.1} parent=11 // pred_check
        %p297 = pneg %p85
      $region18: #{node_embedding_forward.1} parent=11 // pred_check_branch
        %299 = sbr.rel (%p297) target = $region20
      $region19: #{node_embedding_forward.1} parent=11 // pred_region
        _
      $region20: #{node_embedding_forward.1} parent=11 // pred_fallthru
        _
      // Predicated region
      $region21: #{node_embedding_forward.1} parent=11 // pred_check
        %p300 = pneg %p106
      $region22: #{node_embedding_forward.1} parent=11 // pred_check_branch
        %302 = sbr.rel (%p300) target = $region24
      $region23: #{node_embedding_forward.1} parent=11 // pred_region
        _
      $region24: #{node_embedding_forward.1} parent=11 // pred_fallthru
        _
      // Predicated region
      $region25: #{node_embedding_forward.1} parent=11 // pred_check
        %p303 = pneg %p127
      $region26: #{node_embedding_forward.1} parent=11 // pred_check_branch
        %305 = sbr.rel (%p303) target = $region28
      $region27: #{node_embedding_forward.1} parent=11 // pred_region
        _
      $region28: #{node_embedding_forward.1} parent=11 // pred_fallthru
        _
      // Predicated region
      $region29: #{node_embedding_forward.1} parent=11 // pred_check
        %p306 = pneg %p148
      $region30: #{node_embedding_forward.1} parent=11 // pred_check_branch
        %308 = sbr.rel (%p306) target = $region32
      $region31: #{node_embedding_forward.1} parent=11 // pred_region
        _
      $region32: #{node_embedding_forward.1} parent=11 // pred_fallthru
        _
      // Predicated region
      $region33: #{node_embedding_forward.1} parent=11 // pred_check
        %p309 = pneg %p169
      $region34: #{node_embedding_forward.1} parent=11 // pred_check_branch
        %311 = sbr.rel (%p309) target = $region36
      $region35: #{node_embedding_forward.1} parent=11 // pred_region
        _
      $region36: #{node_embedding_forward.1} parent=11 // pred_fallthru
        _
      // Predicated region
      $region37: #{node_embedding_forward.1} parent=11 // pred_check
        %p312 = pneg %p190
      $region38: #{node_embedding_forward.1} parent=11 // pred_check_branch
        %314 = sbr.rel (%p312) target = $region40
      $region39: #{node_embedding_forward.1} parent=11 // pred_region
        _
      $region40: #{node_embedding_forward.1} parent=11 // pred_fallthru
        _
      // Predicated region
      $region41: #{node_embedding_forward.1} parent=11 // pred_check
        %p315 = pneg %p211
      $region42: #{node_embedding_forward.1} parent=11 // pred_check_branch
        %317 = sbr.rel (%p315) target = $region44
      $region43: #{node_embedding_forward.1} parent=11 // pred_region
        _
      $region44: #{node_embedding_forward.1} parent=11 // pred_fallthru
        _
      // Predicated region
      $region45: #{node_embedding_forward.1} parent=11 // pred_check
        %p318 = pneg %p232
      $region46: #{node_embedding_forward.1} parent=11 // pred_check_branch
        %320 = sbr.rel (%p318) target = $region48
      $region47: #{node_embedding_forward.1} parent=11 // pred_region
        _
      $region48: #{node_embedding_forward.1} parent=11 // pred_fallthru
        _
      // Predicated region
      $region49: #{node_embedding_forward.1} parent=11 // pred_check
        %p321 = pneg %p253
      $region50: #{node_embedding_forward.1} parent=11 // pred_check_branch
        %323 = sbr.rel (%p321) target = $region52
      $region51: #{node_embedding_forward.1} parent=11 // pred_region
        _
      $region52: #{node_embedding_forward.1} parent=11 // pred_fallthru
        _
    $region12: #{node_embedding_forward.1} parent=5 // pred_fallthru
      _
    %p324 = scmp.lt.s32.totalorder %s17, 4
    // Predicated region
    $region53: #{node_embedding_forward.1} parent=5 // pred_check
      %p325 = pneg %p324
    $region54: #{node_embedding_forward.1} parent=5 // pred_check_branch
      %327 = sbr.rel (%p325) target = $region56
    $region55: #{node_embedding_forward.1} parent=5 // pred_region
      // Predicated region
      $region57: #{node_embedding_forward.1} parent=55 // pred_check
        %p328 = pneg %p37
      $region58: #{node_embedding_forward.1} parent=55 // pred_check_branch
        %330 = sbr.rel (%p328) target = $region60
      $region59: #{node_embedding_forward.1} parent=55 // pred_region
        %s331 = smul.u32 16, %s17
        %p332 = scmp.lt.s32.totalorder %s331, 63
        %s333 = scalar_select %p332, %s331, 63
        %s334 = smul.addr %s333, 8
        %s335 = scalar_lea.vmem %s0, %s334
        %s336 = smul.u32 16, %s17
      $region60: #{node_embedding_forward.1} parent=55 // pred_fallthru
        _
    $region56: #{node_embedding_forward.1} parent=5 // pred_fallthru
      _
    %p337 = scmp.le.s32.totalorder 1, %s17
    %p338 = scmp.lt.s32.totalorder %s17, 5
    %p339 = pnand %p337, %p338
    %p340 = pneg %p339
    // Predicated region
    $region61: #{node_embedding_forward.1} parent=5 // pred_check
      _
    $region62: #{node_embedding_forward.1} parent=5 // pred_check_branch
      %342 = sbr.rel (%p339) target = $region64
    $region63: #{node_embedding_forward.1} parent=5 // pred_region
      %s343 = ssub.s32 %s17, 1
      %s344 = smul.u32 16, %s22
      %p345 = scmp.lt.s32.totalorder %s344, 63
      %s346 = scalar_select %p345, %s344, 63
      %s347 = smul.addr %s346, 8
      %s348 = scalar_lea.vmem %s0, %s347
      %p349 = pneg %p43
      %p350 = pneg %p40
      %p351 = pneg %p64
      %p352 = pneg %p61
      %p353 = pneg %p85
      %p354 = pneg %p82
      %p355 = pneg %p106
      %p356 = pneg %p103
      %p357 = pneg %p127
      %p358 = pneg %p124
      %p359 = pneg %p148
      %p360 = pneg %p145
      %p361 = pneg %p169
      %p362 = pneg %p166
      %p363 = pneg %p190
      %p364 = pneg %p187
      %p365 = pneg %p211
      %p366 = pneg %p208
      %p367 = pneg %p232
      %p368 = pneg %p229
      %p369 = pneg %p253
      %p370 = pneg %p250
      %p371 = pneg %p279
      %p372 = pneg %p276
      %s373 = smul.u32 16, %s22
      %p374 = scmp.lt.s32.totalorder %s373, 63
      %s375 = scalar_select %p374, %s373, 63
      %s376 = smul.addr %s375, 8
      %s377 = scalar_lea.vmem %s11, %s376
      %s378 = smul.u32 16, %s22
      %p379 = scmp.lt.s32.totalorder %s378, 63
      %s380 = scalar_select %p379, %s378, 63
      %s381 = smul.addr %s380, 8
      %s382 = scalar_lea.vmem %s0, %s381
      %s383 = smul.u32 16, %s22
      %s384 = smul.u32 16, %s22
      %p385 = scmp.lt.s32.totalorder %s384, 63
      %s386 = scalar_select %p385, %s384, 63
      %s387 = smul.addr %s386, 8
      %s388 = scalar_lea.vmem %s11, %s387
      %s389 = smul.u32 16, %s22
      %v390 = vld [vmem:[%s382] sm:$0xff]
      %v391 = vld [vmem:[%s382 + $0x8] sm:$0xff]
      %v392 = vld [vmem:[%s382 + $0x10] sm:$0xff]
      %v393 = vld [vmem:[%s382 + $0x18] sm:$0xff]
      %v394 = vld [vmem:[%s382 + $0x20] sm:$0xff]
      %v395 = vld [vmem:[%s382 + $0x28] sm:$0xff]
      %v396 = vld [vmem:[%s382 + $0x30] sm:$0xff]
      %v397 = vld [vmem:[%s382 + $0x38] sm:$0xff]
      %v398 = vld [vmem:[%s382 + $0x40] sm:$0xff]
      %v399 = vld [vmem:[%s382 + $0x48] sm:$0xff]
      %v400 = vld [vmem:[%s382 + $0x50] sm:$0xff]
      %v401 = vld [vmem:[%s382 + $0x58] sm:$0xff]
      %v402 = vld [vmem:[%s382 + $0x60] sm:$0xff]
      %v403 = vld [vmem:[%s382 + $0x68] sm:$0xff]
      %v404 = vld [vmem:[%s382 + $0x70] sm:$0xff]
      %v405 = vld [vmem:[%s382 + $0x78] sm:$0xff]
      %v406 = vld [vmem:[%s1] sm:$0xff]
      %v407 = vld [vmem:[%s1 + $0x8] sm:$0xff]
      %v408 = vld [vmem:[%s1 + $0x10] sm:$0xff]
      %v409 = vld [vmem:[%s1 + $0x18] sm:$0xff]
      %v410 = vld [vmem:[%s1 + $0x20] sm:$0xff]
      %v411 = vld [vmem:[%s1 + $0x28] sm:$0xff]
      %v412 = vld [vmem:[%s1 + $0x30] sm:$0xff]
      %v413 = vld [vmem:[%s1 + $0x38] sm:$0xff]
      %v414 = vld [vmem:[%s1 + $0x40] sm:$0xff]
      %v415 = vld [vmem:[%s1 + $0x48] sm:$0xff]
      %v416 = vld [vmem:[%s1 + $0x50] sm:$0xff]
      %v417 = vld [vmem:[%s1 + $0x58] sm:$0xff]
      %v418 = vld [vmem:[%s1 + $0x60] sm:$0xff]
      %v419 = vld [vmem:[%s1 + $0x68] sm:$0xff]
      %v420 = vld [vmem:[%s1 + $0x70] sm:$0xff]
      %v421 = vld [vmem:[%s1 + $0x78] sm:$0xff]
      %v422 = vld [vmem:[%s2] sm:$0x1]
      %v424 = vlaneseq
      %v425 = vshrl.u32 %v424, 7
      %v426 = vsub.s32 0, %v425
      %v427 = vrot.slane %v422, %v426
      %429 = vmatprep.subr.mxu0 0.0
      %430 = vmatpush1.msra.mxu0 %v406
      %431 = vmatprep.subr.mxu0 0.0
      %432 = vmatpush1.msra.mxu0 %v407
      %433 = vmatprep.subr.mxu0 0.0
      %434 = vmatpush1.msra.mxu0 %v408
      %435 = vmatprep.subr.mxu0 0.0
      %436 = vmatpush1.msra.mxu0 %v409
      %437 = vmatprep.subr.mxu0 0.0
      %438 = vmatpush1.msra.mxu0 %v410
      %439 = vmatprep.subr.mxu0 0.0
      %440 = vmatpush1.msra.mxu0 %v411
      %441 = vmatprep.subr.mxu0 0.0
      %442 = vmatpush1.msra.mxu0 %v412
      %443 = vmatprep.subr.mxu0 0.0
      %444 = vmatpush1.msra.mxu0 %v413
      %445 = vmatprep.subr.mxu0 0.0
      %446 = vmatpush1.msra.mxu0 %v414
      %447 = vmatprep.subr.mxu0 0.0
      %448 = vmatpush1.msra.mxu0 %v415
      %449 = vmatprep.subr.mxu0 0.0
      %450 = vmatpush1.msra.mxu0 %v416
      %451 = vmatprep.subr.mxu0 0.0
      %452 = vmatpush1.msra.mxu0 %v417
      %453 = vmatprep.subr.mxu0 0.0
      %454 = vmatpush1.msra.mxu0 %v418
      %455 = vmatprep.subr.mxu0 0.0
      %456 = vmatpush1.msra.mxu0 %v419
      %457 = vmatprep.subr.mxu0 0.0
      %458 = vmatpush1.msra.mxu0 %v420
      %459 = vmatprep.subr.mxu0 0.0
      %460 = vmatpush1.msra.mxu0 %v421
      %461 = vmatprep.subr.mxu0 0.0
      %462 = vmatpush1.msra.mxu0 0.0
      %463 = vmatprep.subr.mxu0 0.0
      %464 = vmatpush1.msra.mxu0 0.0
      %465 = vmatprep.subr.mxu0 0.0
      %466 = vmatpush1.msra.mxu0 0.0
      %467 = vmatprep.subr.mxu0 0.0
      %468 = vmatpush1.msra.mxu0 0.0
      %469 = vmatprep.subr.mxu0 0.0
      %470 = vmatpush1.msra.mxu0 0.0
      %471 = vmatprep.subr.mxu0 0.0
      %472 = vmatpush1.msra.mxu0 0.0
      %473 = vmatprep.subr.mxu0 0.0
      %474 = vmatpush1.msra.mxu0 0.0
      %475 = vmatprep.subr.mxu0 0.0
      %476 = vmatpush1.msra.mxu0 0.0
      %477 = vmatprep.subr.mxu0 0.0
      %478 = vmatpush1.msra.mxu0 0.0
      %479 = vmatprep.subr.mxu0 0.0
      %480 = vmatpush1.msra.mxu0 0.0
      %481 = vmatprep.subr.mxu0 0.0
      %482 = vmatpush1.msra.mxu0 0.0
      %483 = vmatprep.subr.mxu0 0.0
      %484 = vmatpush1.msra.mxu0 0.0
      %485 = vmatprep.subr.mxu0 0.0
      %486 = vmatpush1.msra.mxu0 0.0
      %487 = vmatprep.subr.mxu0 0.0
      %488 = vmatpush1.msra.mxu0 0.0
      %489 = vmatprep.subr.mxu0 0.0
      %490 = vmatpush1.msra.mxu0 0.0
      %491 = vmatprep.subr.mxu0 0.0
      %492 = vmatpush1.msra.mxu0 0.0
      %493 = vmatprep.mubr.f32.mxu0 0.0
      %494 = vmatmul.mubr.f32.gmra.mrb[0].mxu0 %v390
      %v495 = vpop.f32.mrb[0].mxu0
      %v496 = vadd.f32 %v427, %v495
      %v497 = vpop.f32.mrb[0].mxu0
      %498 = vmatprep.mubr.f32.mxu0 0.0
      %499 = vmatmul.mubr.f32.gmra.mrb[0].mxu0 %v391
      %v500 = vpop.f32.mrb[0].mxu0
      %v501 = vadd.f32 %v427, %v500
      %v502 = vpop.f32.mrb[0].mxu0
      %503 = vmatprep.mubr.f32.mxu0 0.0
      %504 = vmatmul.mubr.f32.gmra.mrb[0].mxu0 %v392
      %v505 = vpop.f32.mrb[0].mxu0
      %v506 = vadd.f32 %v427, %v505
      %v507 = vpop.f32.mrb[0].mxu0
      %508 = vmatprep.mubr.f32.mxu0 0.0
      %509 = vmatmul.mubr.f32.gmra.mrb[0].mxu0 %v393
      %v510 = vpop.f32.mrb[0].mxu0
      %v511 = vadd.f32 %v427, %v510
      %v512 = vpop.f32.mrb[0].mxu0
      %513 = vmatprep.mubr.f32.mxu0 0.0
      %514 = vmatmul.mubr.f32.gmra.mrb[0].mxu0 %v394
      %v515 = vpop.f32.mrb[0].mxu0
      %v516 = vadd.f32 %v427, %v515
      %v517 = vpop.f32.mrb[0].mxu0
      %518 = vmatprep.mubr.f32.mxu0 0.0
      %519 = vmatmul.mubr.f32.gmra.mrb[0].mxu0 %v395
      %v520 = vpop.f32.mrb[0].mxu0
      %v521 = vadd.f32 %v427, %v520
      %v522 = vpop.f32.mrb[0].mxu0
      %523 = vmatprep.mubr.f32.mxu0 0.0
      %524 = vmatmul.mubr.f32.gmra.mrb[0].mxu0 %v396
      %v525 = vpop.f32.mrb[0].mxu0
      %v526 = vadd.f32 %v427, %v525
      %v527 = vpop.f32.mrb[0].mxu0
      %528 = vmatprep.mubr.f32.mxu0 0.0
      %529 = vmatmul.mubr.f32.gmra.mrb[0].mxu0 %v397
      %v530 = vpop.f32.mrb[0].mxu0
      %v531 = vadd.f32 %v427, %v530
      %v532 = vpop.f32.mrb[0].mxu0
      %533 = vmatprep.mubr.f32.mxu0 0.0
      %534 = vmatmul.mubr.f32.gmra.mrb[0].mxu0 %v398
      %v535 = vpop.f32.mrb[0].mxu0
      %v536 = vadd.f32 %v427, %v535
      %v537 = vpop.f32.mrb[0].mxu0
      %538 = vmatprep.mubr.f32.mxu0 0.0
      %539 = vmatmul.mubr.f32.gmra.mrb[0].mxu0 %v399
      %v540 = vpop.f32.mrb[0].mxu0
      %v541 = vadd.f32 %v427, %v540
      %v542 = vpop.f32.mrb[0].mxu0
      %543 = vmatprep.mubr.f32.mxu0 0.0
      %544 = vmatmul.mubr.f32.gmra.mrb[0].mxu0 %v400
      %v545 = vpop.f32.mrb[0].mxu0
      %v546 = vadd.f32 %v427, %v545
      %v547 = vpop.f32.mrb[0].mxu0
      %548 = vmatprep.mubr.f32.mxu0 0.0
      %549 = vmatmul.mubr.f32.gmra.mrb[0].mxu0 %v401
      %v550 = vpop.f32.mrb[0].mxu0
      %v551 = vadd.f32 %v427, %v550
      %v552 = vpop.f32.mrb[0].mxu0
      %553 = vmatprep.mubr.f32.mxu0 0.0
      %554 = vmatmul.mubr.f32.gmra.mrb[0].mxu0 %v402
      %v555 = vpop.f32.mrb[0].mxu0
      %v556 = vadd.f32 %v427, %v555
      %v557 = vpop.f32.mrb[0].mxu0
      %558 = vmatprep.mubr.f32.mxu0 0.0
      %559 = vmatmul.mubr.f32.gmra.mrb[0].mxu0 %v403
      %v560 = vpop.f32.mrb[0].mxu0
      %v561 = vadd.f32 %v427, %v560
      %v562 = vpop.f32.mrb[0].mxu0
      %563 = vmatprep.mubr.f32.mxu0 0.0
      %564 = vmatmul.mubr.f32.gmra.mrb[0].mxu0 %v404
      %v565 = vpop.f32.mrb[0].mxu0
      %v566 = vadd.f32 %v427, %v565
      %v567 = vpop.f32.mrb[0].mxu0
      %568 = vmatprep.mubr.f32.mxu0 0.0
      %569 = vmatmul.mubr.f32.gmra.mrb[0].mxu0 %v405
      %v570 = vpop.f32.mrb[0].mxu0
      %v571 = vadd.f32 %v427, %v570
      %v572 = vpop.f32.mrb[0].mxu0
      %573 = vdwg.mxu0
      %v574 = vmax.f32 %v496, 0.0
      %v575 = vmax.f32 %v501, 0.0
      %v576 = vmax.f32 %v506, 0.0
      %v577 = vmax.f32 %v511, 0.0
      %v578 = vmax.f32 %v516, 0.0
      %v579 = vmax.f32 %v521, 0.0
      %v580 = vmax.f32 %v526, 0.0
      %v581 = vmax.f32 %v531, 0.0
      %v582 = vmax.f32 %v536, 0.0
      %v583 = vmax.f32 %v541, 0.0
      %v584 = vmax.f32 %v546, 0.0
      %v585 = vmax.f32 %v551, 0.0
      %v586 = vmax.f32 %v556, 0.0
      %v587 = vmax.f32 %v561, 0.0
      %v588 = vmax.f32 %v566, 0.0
      %v589 = vmax.f32 %v571, 0.0
      %v590 = vld [vmem:[%s3] sm:$0xff]
      %v591 = vld [vmem:[%s3 + $0x8] sm:$0xff]
      %v592 = vld [vmem:[%s3 + $0x10] sm:$0xff]
      %v593 = vld [vmem:[%s3 + $0x18] sm:$0xff]
      %v594 = vld [vmem:[%s3 + $0x20] sm:$0xff]
      %v595 = vld [vmem:[%s3 + $0x28] sm:$0xff]
      %v596 = vld [vmem:[%s3 + $0x30] sm:$0xff]
      %v597 = vld [vmem:[%s3 + $0x38] sm:$0xff]
      %v598 = vld [vmem:[%s3 + $0x40] sm:$0xff]
      %v599 = vld [vmem:[%s3 + $0x48] sm:$0xff]
      %v600 = vld [vmem:[%s3 + $0x50] sm:$0xff]
      %v601 = vld [vmem:[%s3 + $0x58] sm:$0xff]
      %v602 = vld [vmem:[%s3 + $0x60] sm:$0xff]
      %v603 = vld [vmem:[%s3 + $0x68] sm:$0xff]
      %v604 = vld [vmem:[%s3 + $0x70] sm:$0xff]
      %v605 = vld [vmem:[%s3 + $0x78] sm:$0xff]
      %v606 = vld [vmem:[%s4] sm:$0x1]
      %v608 = vlaneseq
      %v609 = vshrl.u32 %v608, 7
      %v610 = vsub.s32 0, %v609
      %v611 = vrot.slane %v606, %v610
      %613 = vmatprep.subr.mxu0 0.0
      %614 = vmatpush1.msra.mxu0 %v590
      %615 = vmatprep.subr.mxu0 0.0
      %616 = vmatpush1.msra.mxu0 %v591
      %617 = vmatprep.subr.mxu0 0.0
      %618 = vmatpush1.msra.mxu0 %v592
      %619 = vmatprep.subr.mxu0 0.0
      %620 = vmatpush1.msra.mxu0 %v593
      %621 = vmatprep.subr.mxu0 0.0
      %622 = vmatpush1.msra.mxu0 %v594
      %623 = vmatprep.subr.mxu0 0.0
      %624 = vmatpush1.msra.mxu0 %v595
      %625 = vmatprep.subr.mxu0 0.0
      %626 = vmatpush1.msra.mxu0 %v596
      %627 = vmatprep.subr.mxu0 0.0
      %628 = vmatpush1.msra.mxu0 %v597
      %629 = vmatprep.subr.mxu0 0.0
      %630 = vmatpush1.msra.mxu0 %v598
      %631 = vmatprep.subr.mxu0 0.0
      %632 = vmatpush1.msra.mxu0 %v599
      %633 = vmatprep.subr.mxu0 0.0
      %634 = vmatpush1.msra.mxu0 %v600
      %635 = vmatprep.subr.mxu0 0.0
      %636 = vmatpush1.msra.mxu0 %v601
      %637 = vmatprep.subr.mxu0 0.0
      %638 = vmatpush1.msra.mxu0 %v602
      %639 = vmatprep.subr.mxu0 0.0
      %640 = vmatpush1.msra.mxu0 %v603
      %641 = vmatprep.subr.mxu0 0.0
      %642 = vmatpush1.msra.mxu0 %v604
      %643 = vmatprep.subr.mxu0 0.0
      %644 = vmatpush1.msra.mxu0 %v605
      %645 = vmatprep.subr.mxu0 0.0
      %646 = vmatpush1.msra.mxu0 0.0
      %647 = vmatprep.subr.mxu0 0.0
      %648 = vmatpush1.msra.mxu0 0.0
      %649 = vmatprep.subr.mxu0 0.0
      %650 = vmatpush1.msra.mxu0 0.0
      %651 = vmatprep.subr.mxu0 0.0
      %652 = vmatpush1.msra.mxu0 0.0
      %653 = vmatprep.subr.mxu0 0.0
      %654 = vmatpush1.msra.mxu0 0.0
      %655 = vmatprep.subr.mxu0 0.0
      %656 = vmatpush1.msra.mxu0 0.0
      %657 = vmatprep.subr.mxu0 0.0
      %658 = vmatpush1.msra.mxu0 0.0
      %659 = vmatprep.subr.mxu0 0.0
      %660 = vmatpush1.msra.mxu0 0.0
      %661 = vmatprep.subr.mxu0 0.0
      %662 = vmatpush1.msra.mxu0 0.0
      %663 = vmatprep.subr.mxu0 0.0
      %664 = vmatpush1.msra.mxu0 0.0
      %665 = vmatprep.subr.mxu0 0.0
      %666 = vmatpush1.msra.mxu0 0.0
      %667 = vmatprep.subr.mxu0 0.0
      %668 = vmatpush1.msra.mxu0 0.0
      %669 = vmatprep.subr.mxu0 0.0
      %670 = vmatpush1.msra.mxu0 0.0
      %671 = vmatprep.subr.mxu0 0.0
      %672 = vmatpush1.msra.mxu0 0.0
      %673 = vmatprep.subr.mxu0 0.0
      %674 = vmatpush1.msra.mxu0 0.0
      %675 = vmatprep.subr.mxu0 0.0
      %676 = vmatpush1.msra.mxu0 0.0
      %677 = vmatprep.mubr.f32.mxu0 0.0
      %678 = vmatmul.mubr.f32.gmra.mrb[0].mxu0 %v574
      %v679 = vpop.f32.mrb[0].mxu0
      %v680 = vadd.f32 %v611, %v679
      %v681 = vpop.f32.mrb[0].mxu0
      %682 = vmatprep.mubr.f32.mxu0 0.0
      %683 = vmatmul.mubr.f32.gmra.mrb[0].mxu0 %v575
      %v684 = vpop.f32.mrb[0].mxu0
      %v685 = vadd.f32 %v611, %v684
      %v686 = vpop.f32.mrb[0].mxu0
      %687 = vmatprep.mubr.f32.mxu0 0.0
      %688 = vmatmul.mubr.f32.gmra.mrb[0].mxu0 %v576
      %v689 = vpop.f32.mrb[0].mxu0
      %v690 = vadd.f32 %v611, %v689
      %v691 = vpop.f32.mrb[0].mxu0
      %692 = vmatprep.mubr.f32.mxu0 0.0
      %693 = vmatmul.mubr.f32.gmra.mrb[0].mxu0 %v577
      %v694 = vpop.f32.mrb[0].mxu0
      %v695 = vadd.f32 %v611, %v694
      %v696 = vpop.f32.mrb[0].mxu0
      %697 = vmatprep.mubr.f32.mxu0 0.0
      %698 = vmatmul.mubr.f32.gmra.mrb[0].mxu0 %v578
      %v699 = vpop.f32.mrb[0].mxu0
      %v700 = vadd.f32 %v611, %v699
      %v701 = vpop.f32.mrb[0].mxu0
      %702 = vmatprep.mubr.f32.mxu0 0.0
      %703 = vmatmul.mubr.f32.gmra.mrb[0].mxu0 %v579
      %v704 = vpop.f32.mrb[0].mxu0
      %v705 = vadd.f32 %v611, %v704
      %v706 = vpop.f32.mrb[0].mxu0
      %707 = vmatprep.mubr.f32.mxu0 0.0
      %708 = vmatmul.mubr.f32.gmra.mrb[0].mxu0 %v580
      %v709 = vpop.f32.mrb[0].mxu0
      %v710 = vadd.f32 %v611, %v709
      %v711 = vpop.f32.mrb[0].mxu0
      %712 = vmatprep.mubr.f32.mxu0 0.0
      %713 = vmatmul.mubr.f32.gmra.mrb[0].mxu0 %v581
      %v714 = vpop.f32.mrb[0].mxu0
      %v715 = vadd.f32 %v611, %v714
      %v716 = vpop.f32.mrb[0].mxu0
      %717 = vmatprep.mubr.f32.mxu0 0.0
      %718 = vmatmul.mubr.f32.gmra.mrb[0].mxu0 %v582
      %v719 = vpop.f32.mrb[0].mxu0
      %v720 = vadd.f32 %v611, %v719
      %v721 = vpop.f32.mrb[0].mxu0
      %722 = vmatprep.mubr.f32.mxu0 0.0
      %723 = vmatmul.mubr.f32.gmra.mrb[0].mxu0 %v583
      %v724 = vpop.f32.mrb[0].mxu0
      %v725 = vadd.f32 %v611, %v724
      %v726 = vpop.f32.mrb[0].mxu0
      %727 = vmatprep.mubr.f32.mxu0 0.0
      %728 = vmatmul.mubr.f32.gmra.mrb[0].mxu0 %v584
      %v729 = vpop.f32.mrb[0].mxu0
      %v730 = vadd.f32 %v611, %v729
      %v731 = vpop.f32.mrb[0].mxu0
      %732 = vmatprep.mubr.f32.mxu0 0.0
      %733 = vmatmul.mubr.f32.gmra.mrb[0].mxu0 %v585
      %v734 = vpop.f32.mrb[0].mxu0
      %v735 = vadd.f32 %v611, %v734
      %v736 = vpop.f32.mrb[0].mxu0
      %737 = vmatprep.mubr.f32.mxu0 0.0
      %738 = vmatmul.mubr.f32.gmra.mrb[0].mxu0 %v586
      %v739 = vpop.f32.mrb[0].mxu0
      %v740 = vadd.f32 %v611, %v739
      %v741 = vpop.f32.mrb[0].mxu0
      %742 = vmatprep.mubr.f32.mxu0 0.0
      %743 = vmatmul.mubr.f32.gmra.mrb[0].mxu0 %v587
      %v744 = vpop.f32.mrb[0].mxu0
      %v745 = vadd.f32 %v611, %v744
      %v746 = vpop.f32.mrb[0].mxu0
      %747 = vmatprep.mubr.f32.mxu0 0.0
      %748 = vmatmul.mubr.f32.gmra.mrb[0].mxu0 %v588
      %v749 = vpop.f32.mrb[0].mxu0
      %v750 = vadd.f32 %v611, %v749
      %v751 = vpop.f32.mrb[0].mxu0
      %752 = vmatprep.mubr.f32.mxu0 0.0
      %753 = vmatmul.mubr.f32.gmra.mrb[0].mxu0 %v589
      %v754 = vpop.f32.mrb[0].mxu0
      %v755 = vadd.f32 %v611, %v754
      %v756 = vpop.f32.mrb[0].mxu0
      %757 = vdwg.mxu0
      %v758 = vmax.f32 %v680, 0.0
      %v759 = vmax.f32 %v685, 0.0
      %v760 = vmax.f32 %v690, 0.0
      %v761 = vmax.f32 %v695, 0.0
      %v762 = vmax.f32 %v700, 0.0
      %v763 = vmax.f32 %v705, 0.0
      %v764 = vmax.f32 %v710, 0.0
      %v765 = vmax.f32 %v715, 0.0
      %v766 = vmax.f32 %v720, 0.0
      %v767 = vmax.f32 %v725, 0.0
      %v768 = vmax.f32 %v730, 0.0
      %v769 = vmax.f32 %v735, 0.0
      %v770 = vmax.f32 %v740, 0.0
      %v771 = vmax.f32 %v745, 0.0
      %v772 = vmax.f32 %v750, 0.0
      %v773 = vmax.f32 %v755, 0.0
      %v774 = vld [vmem:[%s5] sm:$0xff]
      %v775 = vld [vmem:[%s5 + $0x8] sm:$0xff]
      %v776 = vld [vmem:[%s5 + $0x10] sm:$0xff]
      %v777 = vld [vmem:[%s5 + $0x18] sm:$0xff]
      %v778 = vld [vmem:[%s5 + $0x20] sm:$0xff]
      %v779 = vld [vmem:[%s5 + $0x28] sm:$0xff]
      %v780 = vld [vmem:[%s5 + $0x30] sm:$0xff]
      %v781 = vld [vmem:[%s5 + $0x38] sm:$0xff]
      %v782 = vld [vmem:[%s5 + $0x40] sm:$0xff]
      %v783 = vld [vmem:[%s5 + $0x48] sm:$0xff]
      %v784 = vld [vmem:[%s5 + $0x50] sm:$0xff]
      %v785 = vld [vmem:[%s5 + $0x58] sm:$0xff]
      %v786 = vld [vmem:[%s5 + $0x60] sm:$0xff]
      %v787 = vld [vmem:[%s5 + $0x68] sm:$0xff]
      %v788 = vld [vmem:[%s5 + $0x70] sm:$0xff]
      %v789 = vld [vmem:[%s5 + $0x78] sm:$0xff]
      %v790 = vld [vmem:[%s6] sm:$0x1]
      %v792 = vlaneseq
      %v793 = vshrl.u32 %v792, 7
      %v794 = vsub.s32 0, %v793
      %v795 = vrot.slane %v790, %v794
      %797 = vmatprep.subr.mxu0 0.0
      %798 = vmatpush1.msra.mxu0 %v774
      %799 = vmatprep.subr.mxu0 0.0
      %800 = vmatpush1.msra.mxu0 %v775
      %801 = vmatprep.subr.mxu0 0.0
      %802 = vmatpush1.msra.mxu0 %v776
      %803 = vmatprep.subr.mxu0 0.0
      %804 = vmatpush1.msra.mxu0 %v777
      %805 = vmatprep.subr.mxu0 0.0
      %806 = vmatpush1.msra.mxu0 %v778
      %807 = vmatprep.subr.mxu0 0.0
      %808 = vmatpush1.msra.mxu0 %v779
      %809 = vmatprep.subr.mxu0 0.0
      %810 = vmatpush1.msra.mxu0 %v780
      %811 = vmatprep.subr.mxu0 0.0
      %812 = vmatpush1.msra.mxu0 %v781
      %813 = vmatprep.subr.mxu0 0.0
      %814 = vmatpush1.msra.mxu0 %v782
      %815 = vmatprep.subr.mxu0 0.0
      %816 = vmatpush1.msra.mxu0 %v783
      %817 = vmatprep.subr.mxu0 0.0
      %818 = vmatpush1.msra.mxu0 %v784
      %819 = vmatprep.subr.mxu0 0.0
      %820 = vmatpush1.msra.mxu0 %v785
      %821 = vmatprep.subr.mxu0 0.0
      %822 = vmatpush1.msra.mxu0 %v786
      %823 = vmatprep.subr.mxu0 0.0
      %824 = vmatpush1.msra.mxu0 %v787
      %825 = vmatprep.subr.mxu0 0.0
      %826 = vmatpush1.msra.mxu0 %v788
      %827 = vmatprep.subr.mxu0 0.0
      %828 = vmatpush1.msra.mxu0 %v789
      %829 = vmatprep.subr.mxu0 0.0
      %830 = vmatpush1.msra.mxu0 0.0
      %831 = vmatprep.subr.mxu0 0.0
      %832 = vmatpush1.msra.mxu0 0.0
      %833 = vmatprep.subr.mxu0 0.0
      %834 = vmatpush1.msra.mxu0 0.0
      %835 = vmatprep.subr.mxu0 0.0
      %836 = vmatpush1.msra.mxu0 0.0
      %837 = vmatprep.subr.mxu0 0.0
      %838 = vmatpush1.msra.mxu0 0.0
      %839 = vmatprep.subr.mxu0 0.0
      %840 = vmatpush1.msra.mxu0 0.0
      %841 = vmatprep.subr.mxu0 0.0
      %842 = vmatpush1.msra.mxu0 0.0
      %843 = vmatprep.subr.mxu0 0.0
      %844 = vmatpush1.msra.mxu0 0.0
      %845 = vmatprep.subr.mxu0 0.0
      %846 = vmatpush1.msra.mxu0 0.0
      %847 = vmatprep.subr.mxu0 0.0
      %848 = vmatpush1.msra.mxu0 0.0
      %849 = vmatprep.subr.mxu0 0.0
      %850 = vmatpush1.msra.mxu0 0.0
      %851 = vmatprep.subr.mxu0 0.0
      %852 = vmatpush1.msra.mxu0 0.0
      %853 = vmatprep.subr.mxu0 0.0
      %854 = vmatpush1.msra.mxu0 0.0
      %855 = vmatprep.subr.mxu0 0.0
      %856 = vmatpush1.msra.mxu0 0.0
      %857 = vmatprep.subr.mxu0 0.0
      %858 = vmatpush1.msra.mxu0 0.0
      %859 = vmatprep.subr.mxu0 0.0
      %860 = vmatpush1.msra.mxu0 0.0
      %861 = vmatprep.mubr.f32.mxu0 0.0
      %862 = vmatmul.mubr.f32.gmra.mrb[0].mxu0 %v758
      %v863 = vpop.f32.mrb[0].mxu0
      %v864 = vadd.f32 %v795, %v863
      %v865 = vpop.f32.mrb[0].mxu0
      %866 = vmatprep.mubr.f32.mxu0 0.0
      %867 = vmatmul.mubr.f32.gmra.mrb[0].mxu0 %v759
      %v868 = vpop.f32.mrb[0].mxu0
      %v869 = vadd.f32 %v795, %v868
      %v870 = vpop.f32.mrb[0].mxu0
      %871 = vmatprep.mubr.f32.mxu0 0.0
      %872 = vmatmul.mubr.f32.gmra.mrb[0].mxu0 %v760
      %v873 = vpop.f32.mrb[0].mxu0
      %v874 = vadd.f32 %v795, %v873
      %v875 = vpop.f32.mrb[0].mxu0
      %876 = vmatprep.mubr.f32.mxu0 0.0
      %877 = vmatmul.mubr.f32.gmra.mrb[0].mxu0 %v761
      %v878 = vpop.f32.mrb[0].mxu0
      %v879 = vadd.f32 %v795, %v878
      %v880 = vpop.f32.mrb[0].mxu0
      %881 = vmatprep.mubr.f32.mxu0 0.0
      %882 = vmatmul.mubr.f32.gmra.mrb[0].mxu0 %v762
      %v883 = vpop.f32.mrb[0].mxu0
      %v884 = vadd.f32 %v795, %v883
      %v885 = vpop.f32.mrb[0].mxu0
      %886 = vmatprep.mubr.f32.mxu0 0.0
      %887 = vmatmul.mubr.f32.gmra.mrb[0].mxu0 %v763
      %v888 = vpop.f32.mrb[0].mxu0
      %v889 = vadd.f32 %v795, %v888
      %v890 = vpop.f32.mrb[0].mxu0
      %891 = vmatprep.mubr.f32.mxu0 0.0
      %892 = vmatmul.mubr.f32.gmra.mrb[0].mxu0 %v764
      %v893 = vpop.f32.mrb[0].mxu0
      %v894 = vadd.f32 %v795, %v893
      %v895 = vpop.f32.mrb[0].mxu0
      %896 = vmatprep.mubr.f32.mxu0 0.0
      %897 = vmatmul.mubr.f32.gmra.mrb[0].mxu0 %v765
      %v898 = vpop.f32.mrb[0].mxu0
      %v899 = vadd.f32 %v795, %v898
      %v900 = vpop.f32.mrb[0].mxu0
      %901 = vmatprep.mubr.f32.mxu0 0.0
      %902 = vmatmul.mubr.f32.gmra.mrb[0].mxu0 %v766
      %v903 = vpop.f32.mrb[0].mxu0
      %v904 = vadd.f32 %v795, %v903
      %v905 = vpop.f32.mrb[0].mxu0
      %906 = vmatprep.mubr.f32.mxu0 0.0
      %907 = vmatmul.mubr.f32.gmra.mrb[0].mxu0 %v767
      %v908 = vpop.f32.mrb[0].mxu0
      %v909 = vadd.f32 %v795, %v908
      %v910 = vpop.f32.mrb[0].mxu0
      %911 = vmatprep.mubr.f32.mxu0 0.0
      %912 = vmatmul.mubr.f32.gmra.mrb[0].mxu0 %v768
      %v913 = vpop.f32.mrb[0].mxu0
      %v914 = vadd.f32 %v795, %v913
      %v915 = vpop.f32.mrb[0].mxu0
      %916 = vmatprep.mubr.f32.mxu0 0.0
      %917 = vmatmul.mubr.f32.gmra.mrb[0].mxu0 %v769
      %v918 = vpop.f32.mrb[0].mxu0
      %v919 = vadd.f32 %v795, %v918
      %v920 = vpop.f32.mrb[0].mxu0
      %921 = vmatprep.mubr.f32.mxu0 0.0
      %922 = vmatmul.mubr.f32.gmra.mrb[0].mxu0 %v770
      %v923 = vpop.f32.mrb[0].mxu0
      %v924 = vadd.f32 %v795, %v923
      %v925 = vpop.f32.mrb[0].mxu0
      %926 = vmatprep.mubr.f32.mxu0 0.0
      %927 = vmatmul.mubr.f32.gmra.mrb[0].mxu0 %v771
      %v928 = vpop.f32.mrb[0].mxu0
      %v929 = vadd.f32 %v795, %v928
      %v930 = vpop.f32.mrb[0].mxu0
      %931 = vmatprep.mubr.f32.mxu0 0.0
      %932 = vmatmul.mubr.f32.gmra.mrb[0].mxu0 %v772
      %v933 = vpop.f32.mrb[0].mxu0
      %v934 = vadd.f32 %v795, %v933
      %v935 = vpop.f32.mrb[0].mxu0
      %936 = vmatprep.mubr.f32.mxu0 0.0
      %937 = vmatmul.mubr.f32.gmra.mrb[0].mxu0 %v773
      %v938 = vpop.f32.mrb[0].mxu0
      %v939 = vadd.f32 %v795, %v938
      %v940 = vpop.f32.mrb[0].mxu0
      %941 = vdwg.mxu0
      %v942 = vmax.f32 %v864, 0.0
      %v943 = vmax.f32 %v869, 0.0
      %v944 = vmax.f32 %v874, 0.0
      %v945 = vmax.f32 %v879, 0.0
      %v946 = vmax.f32 %v884, 0.0
      %v947 = vmax.f32 %v889, 0.0
      %v948 = vmax.f32 %v894, 0.0
      %v949 = vmax.f32 %v899, 0.0
      %v950 = vmax.f32 %v904, 0.0
      %v951 = vmax.f32 %v909, 0.0
      %v952 = vmax.f32 %v914, 0.0
      %v953 = vmax.f32 %v919, 0.0
      %v954 = vmax.f32 %v924, 0.0
      %v955 = vmax.f32 %v929, 0.0
      %v956 = vmax.f32 %v934, 0.0
      %v957 = vmax.f32 %v939, 0.0
      %v958 = vld [vmem:[%s7] sm:$0xff]
      %v959 = vld [vmem:[%s7 + $0x8] sm:$0xff]
      %v960 = vld [vmem:[%s7 + $0x10] sm:$0xff]
      %v961 = vld [vmem:[%s7 + $0x18] sm:$0xff]
      %v962 = vld [vmem:[%s7 + $0x20] sm:$0xff]
      %v963 = vld [vmem:[%s7 + $0x28] sm:$0xff]
      %v964 = vld [vmem:[%s7 + $0x30] sm:$0xff]
      %v965 = vld [vmem:[%s7 + $0x38] sm:$0xff]
      %v966 = vld [vmem:[%s7 + $0x40] sm:$0xff]
      %v967 = vld [vmem:[%s7 + $0x48] sm:$0xff]
      %v968 = vld [vmem:[%s7 + $0x50] sm:$0xff]
      %v969 = vld [vmem:[%s7 + $0x58] sm:$0xff]
      %v970 = vld [vmem:[%s7 + $0x60] sm:$0xff]
      %v971 = vld [vmem:[%s7 + $0x68] sm:$0xff]
      %v972 = vld [vmem:[%s7 + $0x70] sm:$0xff]
      %v973 = vld [vmem:[%s7 + $0x78] sm:$0xff]
      %v974 = vld [vmem:[%s8] sm:$0x1]
      %v976 = vlaneseq
      %v977 = vshrl.u32 %v976, 7
      %v978 = vsub.s32 0, %v977
      %v979 = vrot.slane %v974, %v978
      %981 = vmatprep.subr.mxu0 0.0
      %982 = vmatpush1.msra.mxu0 %v958
      %983 = vmatprep.subr.mxu0 0.0
      %984 = vmatpush1.msra.mxu0 %v959
      %985 = vmatprep.subr.mxu0 0.0
      %986 = vmatpush1.msra.mxu0 %v960
      %987 = vmatprep.subr.mxu0 0.0
      %988 = vmatpush1.msra.mxu0 %v961
      %989 = vmatprep.subr.mxu0 0.0
      %990 = vmatpush1.msra.mxu0 %v962
      %991 = vmatprep.subr.mxu0 0.0
      %992 = vmatpush1.msra.mxu0 %v963
      %993 = vmatprep.subr.mxu0 0.0
      %994 = vmatpush1.msra.mxu0 %v964
      %995 = vmatprep.subr.mxu0 0.0
      %996 = vmatpush1.msra.mxu0 %v965
      %997 = vmatprep.subr.mxu0 0.0
      %998 = vmatpush1.msra.mxu0 %v966
      %999 = vmatprep.subr.mxu0 0.0
      %1000 = vmatpush1.msra.mxu0 %v967
      %1001 = vmatprep.subr.mxu0 0.0
      %1002 = vmatpush1.msra.mxu0 %v968
      %1003 = vmatprep.subr.mxu0 0.0
      %1004 = vmatpush1.msra.mxu0 %v969
      %1005 = vmatprep.subr.mxu0 0.0
      %1006 = vmatpush1.msra.mxu0 %v970
      %1007 = vmatprep.subr.mxu0 0.0
      %1008 = vmatpush1.msra.mxu0 %v971
      %1009 = vmatprep.subr.mxu0 0.0
      %1010 = vmatpush1.msra.mxu0 %v972
      %1011 = vmatprep.subr.mxu0 0.0
      %1012 = vmatpush1.msra.mxu0 %v973
      %1013 = vmatprep.subr.mxu0 0.0
      %1014 = vmatpush1.msra.mxu0 0.0
      %1015 = vmatprep.subr.mxu0 0.0
      %1016 = vmatpush1.msra.mxu0 0.0
      %1017 = vmatprep.subr.mxu0 0.0
      %1018 = vmatpush1.msra.mxu0 0.0
      %1019 = vmatprep.subr.mxu0 0.0
      %1020 = vmatpush1.msra.mxu0 0.0
      %1021 = vmatprep.subr.mxu0 0.0
      %1022 = vmatpush1.msra.mxu0 0.0
      %1023 = vmatprep.subr.mxu0 0.0
      %1024 = vmatpush1.msra.mxu0 0.0
      %1025 = vmatprep.subr.mxu0 0.0
      %1026 = vmatpush1.msra.mxu0 0.0
      %1027 = vmatprep.subr.mxu0 0.0
      %1028 = vmatpush1.msra.mxu0 0.0
      %1029 = vmatprep.subr.mxu0 0.0
      %1030 = vmatpush1.msra.mxu0 0.0
      %1031 = vmatprep.subr.mxu0 0.0
      %1032 = vmatpush1.msra.mxu0 0.0
      %1033 = vmatprep.subr.mxu0 0.0
      %1034 = vmatpush1.msra.mxu0 0.0
      %1035 = vmatprep.subr.mxu0 0.0
      %1036 = vmatpush1.msra.mxu0 0.0
      %1037 = vmatprep.subr.mxu0 0.0
      %1038 = vmatpush1.msra.mxu0 0.0
      %1039 = vmatprep.subr.mxu0 0.0
      %1040 = vmatpush1.msra.mxu0 0.0
      %1041 = vmatprep.subr.mxu0 0.0
      %1042 = vmatpush1.msra.mxu0 0.0
      %1043 = vmatprep.subr.mxu0 0.0
      %1044 = vmatpush1.msra.mxu0 0.0
      %1045 = vmatprep.mubr.f32.mxu0 0.0
      %1046 = vmatmul.mubr.f32.gmra.mrb[0].mxu0 %v942
      %v1047 = vpop.f32.mrb[0].mxu0
      %v1048 = vadd.f32 %v979, %v1047
      %v1049 = vpop.f32.mrb[0].mxu0
      %1050 = vmatprep.mubr.f32.mxu0 0.0
      %1051 = vmatmul.mubr.f32.gmra.mrb[0].mxu0 %v943
      %v1052 = vpop.f32.mrb[0].mxu0
      %v1053 = vadd.f32 %v979, %v1052
      %v1054 = vpop.f32.mrb[0].mxu0
      %1055 = vmatprep.mubr.f32.mxu0 0.0
      %1056 = vmatmul.mubr.f32.gmra.mrb[0].mxu0 %v944
      %v1057 = vpop.f32.mrb[0].mxu0
      %v1058 = vadd.f32 %v979, %v1057
      %v1059 = vpop.f32.mrb[0].mxu0
      %1060 = vmatprep.mubr.f32.mxu0 0.0
      %1061 = vmatmul.mubr.f32.gmra.mrb[0].mxu0 %v945
      %v1062 = vpop.f32.mrb[0].mxu0
      %v1063 = vadd.f32 %v979, %v1062
      %v1064 = vpop.f32.mrb[0].mxu0
      %1065 = vmatprep.mubr.f32.mxu0 0.0
      %1066 = vmatmul.mubr.f32.gmra.mrb[0].mxu0 %v946
      %v1067 = vpop.f32.mrb[0].mxu0
      %v1068 = vadd.f32 %v979, %v1067
      %v1069 = vpop.f32.mrb[0].mxu0
      %1070 = vmatprep.mubr.f32.mxu0 0.0
      %1071 = vmatmul.mubr.f32.gmra.mrb[0].mxu0 %v947
      %v1072 = vpop.f32.mrb[0].mxu0
      %v1073 = vadd.f32 %v979, %v1072
      %v1074 = vpop.f32.mrb[0].mxu0
      %1075 = vmatprep.mubr.f32.mxu0 0.0
      %1076 = vmatmul.mubr.f32.gmra.mrb[0].mxu0 %v948
      %v1077 = vpop.f32.mrb[0].mxu0
      %v1078 = vadd.f32 %v979, %v1077
      %v1079 = vpop.f32.mrb[0].mxu0
      %1080 = vmatprep.mubr.f32.mxu0 0.0
      %1081 = vmatmul.mubr.f32.gmra.mrb[0].mxu0 %v949
      %v1082 = vpop.f32.mrb[0].mxu0
      %v1083 = vadd.f32 %v979, %v1082
      %v1084 = vpop.f32.mrb[0].mxu0
      %1085 = vmatprep.mubr.f32.mxu0 0.0
      %1086 = vmatmul.mubr.f32.gmra.mrb[0].mxu0 %v950
      %v1087 = vpop.f32.mrb[0].mxu0
      %v1088 = vadd.f32 %v979, %v1087
      %v1089 = vpop.f32.mrb[0].mxu0
      %1090 = vmatprep.mubr.f32.mxu0 0.0
      %1091 = vmatmul.mubr.f32.gmra.mrb[0].mxu0 %v951
      %v1092 = vpop.f32.mrb[0].mxu0
      %v1093 = vadd.f32 %v979, %v1092
      %v1094 = vpop.f32.mrb[0].mxu0
      %1095 = vmatprep.mubr.f32.mxu0 0.0
      %1096 = vmatmul.mubr.f32.gmra.mrb[0].mxu0 %v952
      %v1097 = vpop.f32.mrb[0].mxu0
      %v1098 = vadd.f32 %v979, %v1097
      %v1099 = vpop.f32.mrb[0].mxu0
      %1100 = vmatprep.mubr.f32.mxu0 0.0
      %1101 = vmatmul.mubr.f32.gmra.mrb[0].mxu0 %v953
      %v1102 = vpop.f32.mrb[0].mxu0
      %v1103 = vadd.f32 %v979, %v1102
      %v1104 = vpop.f32.mrb[0].mxu0
      %1105 = vmatprep.mubr.f32.mxu0 0.0
      %1106 = vmatmul.mubr.f32.gmra.mrb[0].mxu0 %v954
      %v1107 = vpop.f32.mrb[0].mxu0
      %v1108 = vadd.f32 %v979, %v1107
      %v1109 = vpop.f32.mrb[0].mxu0
      %1110 = vmatprep.mubr.f32.mxu0 0.0
      %1111 = vmatmul.mubr.f32.gmra.mrb[0].mxu0 %v955
      %v1112 = vpop.f32.mrb[0].mxu0
      %v1113 = vadd.f32 %v979, %v1112
      %v1114 = vpop.f32.mrb[0].mxu0
      %1115 = vmatprep.mubr.f32.mxu0 0.0
      %1116 = vmatmul.mubr.f32.gmra.mrb[0].mxu0 %v956
      %v1117 = vpop.f32.mrb[0].mxu0
      %v1118 = vadd.f32 %v979, %v1117
      %v1119 = vpop.f32.mrb[0].mxu0
      %1120 = vmatprep.mubr.f32.mxu0 0.0
      %1121 = vmatmul.mubr.f32.gmra.mrb[0].mxu0 %v957
      %v1122 = vpop.f32.mrb[0].mxu0
      %v1123 = vadd.f32 %v979, %v1122
      %v1124 = vpop.f32.mrb[0].mxu0
      %1125 = vdwg.mxu0
      %v1126 = vmax.f32 %v1048, 0.0
      %v1127 = vmax.f32 %v1053, 0.0
      %v1128 = vmax.f32 %v1058, 0.0
      %v1129 = vmax.f32 %v1063, 0.0
      %v1130 = vmax.f32 %v1068, 0.0
      %v1131 = vmax.f32 %v1073, 0.0
      %v1132 = vmax.f32 %v1078, 0.0
      %v1133 = vmax.f32 %v1083, 0.0
      %v1134 = vmax.f32 %v1088, 0.0
      %v1135 = vmax.f32 %v1093, 0.0
      %v1136 = vmax.f32 %v1098, 0.0
      %v1137 = vmax.f32 %v1103, 0.0
      %v1138 = vmax.f32 %v1108, 0.0
      %v1139 = vmax.f32 %v1113, 0.0
      %v1140 = vmax.f32 %v1118, 0.0
      %v1141 = vmax.f32 %v1123, 0.0
      %v1142 = vld [vmem:[%s9] sm:$0xff]
      %v1143 = vld [vmem:[%s9 + $0x8] sm:$0xff]
      %v1144 = vld [vmem:[%s9 + $0x10] sm:$0xff]
      %v1145 = vld [vmem:[%s9 + $0x18] sm:$0xff]
      %v1146 = vld [vmem:[%s9 + $0x20] sm:$0xff]
      %v1147 = vld [vmem:[%s9 + $0x28] sm:$0xff]
      %v1148 = vld [vmem:[%s9 + $0x30] sm:$0xff]
      %v1149 = vld [vmem:[%s9 + $0x38] sm:$0xff]
      %v1150 = vld [vmem:[%s9 + $0x40] sm:$0xff]
      %v1151 = vld [vmem:[%s9 + $0x48] sm:$0xff]
      %v1152 = vld [vmem:[%s9 + $0x50] sm:$0xff]
      %v1153 = vld [vmem:[%s9 + $0x58] sm:$0xff]
      %v1154 = vld [vmem:[%s9 + $0x60] sm:$0xff]
      %v1155 = vld [vmem:[%s9 + $0x68] sm:$0xff]
      %v1156 = vld [vmem:[%s9 + $0x70] sm:$0xff]
      %v1157 = vld [vmem:[%s9 + $0x78] sm:$0xff]
      %v1158 = vld [vmem:[%s10] sm:$0x1]
      %v1160 = vlaneseq
      %v1161 = vshrl.u32 %v1160, 7
      %v1162 = vsub.s32 0, %v1161
      %v1163 = vrot.slane %v1158, %v1162
      %1165 = vmatprep.subr.mxu0 0.0
      %1166 = vmatpush1.msra.mxu0 %v1142
      %1167 = vmatprep.subr.mxu0 0.0
      %1168 = vmatpush1.msra.mxu0 %v1143
      %1169 = vmatprep.subr.mxu0 0.0
      %1170 = vmatpush1.msra.mxu0 %v1144
      %1171 = vmatprep.subr.mxu0 0.0
      %1172 = vmatpush1.msra.mxu0 %v1145
      %1173 = vmatprep.subr.mxu0 0.0
      %1174 = vmatpush1.msra.mxu0 %v1146
      %1175 = vmatprep.subr.mxu0 0.0
      %1176 = vmatpush1.msra.mxu0 %v1147
      %1177 = vmatprep.subr.mxu0 0.0
      %1178 = vmatpush1.msra.mxu0 %v1148
      %1179 = vmatprep.subr.mxu0 0.0
      %1180 = vmatpush1.msra.mxu0 %v1149
      %1181 = vmatprep.subr.mxu0 0.0
      %1182 = vmatpush1.msra.mxu0 %v1150
      %1183 = vmatprep.subr.mxu0 0.0
      %1184 = vmatpush1.msra.mxu0 %v1151
      %1185 = vmatprep.subr.mxu0 0.0
      %1186 = vmatpush1.msra.mxu0 %v1152
      %1187 = vmatprep.subr.mxu0 0.0
      %1188 = vmatpush1.msra.mxu0 %v1153
      %1189 = vmatprep.subr.mxu0 0.0
      %1190 = vmatpush1.msra.mxu0 %v1154
      %1191 = vmatprep.subr.mxu0 0.0
      %1192 = vmatpush1.msra.mxu0 %v1155
      %1193 = vmatprep.subr.mxu0 0.0
      %1194 = vmatpush1.msra.mxu0 %v1156
      %1195 = vmatprep.subr.mxu0 0.0
      %1196 = vmatpush1.msra.mxu0 %v1157
      %1197 = vmatprep.subr.mxu0 0.0
      %1198 = vmatpush1.msra.mxu0 0.0
      %1199 = vmatprep.subr.mxu0 0.0
      %1200 = vmatpush1.msra.mxu0 0.0
      %1201 = vmatprep.subr.mxu0 0.0
      %1202 = vmatpush1.msra.mxu0 0.0
      %1203 = vmatprep.subr.mxu0 0.0
      %1204 = vmatpush1.msra.mxu0 0.0
      %1205 = vmatprep.subr.mxu0 0.0
      %1206 = vmatpush1.msra.mxu0 0.0
      %1207 = vmatprep.subr.mxu0 0.0
      %1208 = vmatpush1.msra.mxu0 0.0
      %1209 = vmatprep.subr.mxu0 0.0
      %1210 = vmatpush1.msra.mxu0 0.0
      %1211 = vmatprep.subr.mxu0 0.0
      %1212 = vmatpush1.msra.mxu0 0.0
      %1213 = vmatprep.subr.mxu0 0.0
      %1214 = vmatpush1.msra.mxu0 0.0
      %1215 = vmatprep.subr.mxu0 0.0
      %1216 = vmatpush1.msra.mxu0 0.0
      %1217 = vmatprep.subr.mxu0 0.0
      %1218 = vmatpush1.msra.mxu0 0.0
      %1219 = vmatprep.subr.mxu0 0.0
      %1220 = vmatpush1.msra.mxu0 0.0
      %1221 = vmatprep.subr.mxu0 0.0
      %1222 = vmatpush1.msra.mxu0 0.0
      %1223 = vmatprep.subr.mxu0 0.0
      %1224 = vmatpush1.msra.mxu0 0.0
      %1225 = vmatprep.subr.mxu0 0.0
      %1226 = vmatpush1.msra.mxu0 0.0
      %1227 = vmatprep.subr.mxu0 0.0
      %1228 = vmatpush1.msra.mxu0 0.0
      %1229 = vmatprep.mubr.f32.mxu0 0.0
      %1230 = vmatmul.mubr.f32.gmra.mrb[0].mxu0 %v1126
      %v1231 = vpop.f32.mrb[0].mxu0
      %v1232 = vadd.f32 %v1163, %v1231
      %v1233 = vpop.f32.mrb[0].mxu0
      %1234 = vmatprep.mubr.f32.mxu0 0.0
      %1235 = vmatmul.mubr.f32.gmra.mrb[0].mxu0 %v1127
      %v1236 = vpop.f32.mrb[0].mxu0
      %v1237 = vadd.f32 %v1163, %v1236
      %v1238 = vpop.f32.mrb[0].mxu0
      %1239 = vmatprep.mubr.f32.mxu0 0.0
      %1240 = vmatmul.mubr.f32.gmra.mrb[0].mxu0 %v1128
      %v1241 = vpop.f32.mrb[0].mxu0
      %v1242 = vadd.f32 %v1163, %v1241
      %v1243 = vpop.f32.mrb[0].mxu0
      %1244 = vmatprep.mubr.f32.mxu0 0.0
      %1245 = vmatmul.mubr.f32.gmra.mrb[0].mxu0 %v1129
      %v1246 = vpop.f32.mrb[0].mxu0
      %v1247 = vadd.f32 %v1163, %v1246
      %v1248 = vpop.f32.mrb[0].mxu0
      %1249 = vmatprep.mubr.f32.mxu0 0.0
      %1250 = vmatmul.mubr.f32.gmra.mrb[0].mxu0 %v1130
      %v1251 = vpop.f32.mrb[0].mxu0
      %v1252 = vadd.f32 %v1163, %v1251
      %v1253 = vpop.f32.mrb[0].mxu0
      %1254 = vmatprep.mubr.f32.mxu0 0.0
      %1255 = vmatmul.mubr.f32.gmra.mrb[0].mxu0 %v1131
      %v1256 = vpop.f32.mrb[0].mxu0
      %v1257 = vadd.f32 %v1163, %v1256
      %v1258 = vpop.f32.mrb[0].mxu0
      %1259 = vmatprep.mubr.f32.mxu0 0.0
      %1260 = vmatmul.mubr.f32.gmra.mrb[0].mxu0 %v1132
      %v1261 = vpop.f32.mrb[0].mxu0
      %v1262 = vadd.f32 %v1163, %v1261
      %v1263 = vpop.f32.mrb[0].mxu0
      %1264 = vmatprep.mubr.f32.mxu0 0.0
      %1265 = vmatmul.mubr.f32.gmra.mrb[0].mxu0 %v1133
      %v1266 = vpop.f32.mrb[0].mxu0
      %v1267 = vadd.f32 %v1163, %v1266
      %v1268 = vpop.f32.mrb[0].mxu0
      %1269 = vmatprep.mubr.f32.mxu0 0.0
      %1270 = vmatmul.mubr.f32.gmra.mrb[0].mxu0 %v1134
      %v1271 = vpop.f32.mrb[0].mxu0
      %v1272 = vadd.f32 %v1163, %v1271
      %v1273 = vpop.f32.mrb[0].mxu0
      %1274 = vmatprep.mubr.f32.mxu0 0.0
      %1275 = vmatmul.mubr.f32.gmra.mrb[0].mxu0 %v1135
      %v1276 = vpop.f32.mrb[0].mxu0
      %v1277 = vadd.f32 %v1163, %v1276
      %v1278 = vpop.f32.mrb[0].mxu0
      %1279 = vmatprep.mubr.f32.mxu0 0.0
      %1280 = vmatmul.mubr.f32.gmra.mrb[0].mxu0 %v1136
      %v1281 = vpop.f32.mrb[0].mxu0
      %v1282 = vadd.f32 %v1163, %v1281
      %v1283 = vpop.f32.mrb[0].mxu0
      %1284 = vmatprep.mubr.f32.mxu0 0.0
      %1285 = vmatmul.mubr.f32.gmra.mrb[0].mxu0 %v1137
      %v1286 = vpop.f32.mrb[0].mxu0
      %v1287 = vadd.f32 %v1163, %v1286
      %v1288 = vpop.f32.mrb[0].mxu0
      %1289 = vmatprep.mubr.f32.mxu0 0.0
      %1290 = vmatmul.mubr.f32.gmra.mrb[0].mxu0 %v1138
      %v1291 = vpop.f32.mrb[0].mxu0
      %v1292 = vadd.f32 %v1163, %v1291
      %v1293 = vpop.f32.mrb[0].mxu0
      %1294 = vmatprep.mubr.f32.mxu0 0.0
      %1295 = vmatmul.mubr.f32.gmra.mrb[0].mxu0 %v1139
      %v1296 = vpop.f32.mrb[0].mxu0
      %v1297 = vadd.f32 %v1163, %v1296
      %v1298 = vpop.f32.mrb[0].mxu0
      %1299 = vmatprep.mubr.f32.mxu0 0.0
      %1300 = vmatmul.mubr.f32.gmra.mrb[0].mxu0 %v1140
      %v1301 = vpop.f32.mrb[0].mxu0
      %v1302 = vadd.f32 %v1163, %v1301
      %v1303 = vpop.f32.mrb[0].mxu0
      %1304 = vmatprep.mubr.f32.mxu0 0.0
      %1305 = vmatmul.mubr.f32.gmra.mrb[0].mxu0 %v1141
      %v1306 = vpop.f32.mrb[0].mxu0
      %v1307 = vadd.f32 %v1163, %v1306
      %v1308 = vpop.f32.mrb[0].mxu0
      %1309 = vdwg.mxu0
      %v1310 = vtanh.pop %v1232
      %v1311 = vtanh.pop %v1237
      %v1312 = vtanh.pop %v1242
      %v1313 = vtanh.pop %v1247
      %v1314 = vtanh.pop %v1252
      %v1315 = vtanh.pop %v1257
      %v1316 = vtanh.pop %v1262
      %v1317 = vtanh.pop %v1267
      %v1318 = vtanh.pop %v1272
      %v1319 = vtanh.pop %v1277
      %v1320 = vtanh.pop %v1282
      %v1321 = vtanh.pop %v1287
      %v1322 = vtanh.pop %v1292
      %v1323 = vtanh.pop %v1297
      %v1324 = vtanh.pop %v1302
      %v1325 = vtanh.pop %v1307
      %1326 = vst [vmem:[%s388] sm:$0xff] %v1310
      %1327 = vst [vmem:[%s388 + $0x8] sm:$0xff] %v1311
      %1328 = vst [vmem:[%s388 + $0x10] sm:$0xff] %v1312
      %1329 = vst [vmem:[%s388 + $0x18] sm:$0xff] %v1313
      %1330 = vst [vmem:[%s388 + $0x20] sm:$0xff] %v1314
      %1331 = vst [vmem:[%s388 + $0x28] sm:$0xff] %v1315
      %1332 = vst [vmem:[%s388 + $0x30] sm:$0xff] %v1316
      %1333 = vst [vmem:[%s388 + $0x38] sm:$0xff] %v1317
      %1334 = vst [vmem:[%s388 + $0x40] sm:$0xff] %v1318
      %1335 = vst [vmem:[%s388 + $0x48] sm:$0xff] %v1319
      %1336 = vst [vmem:[%s388 + $0x50] sm:$0xff] %v1320
      %1337 = vst [vmem:[%s388 + $0x58] sm:$0xff] %v1321
      %1338 = vst [vmem:[%s388 + $0x60] sm:$0xff] %v1322
      %1339 = vst [vmem:[%s388 + $0x68] sm:$0xff] %v1323
      %1340 = vst [vmem:[%s388 + $0x70] sm:$0xff] %v1324
      %1341 = vst [vmem:[%s388 + $0x78] sm:$0xff] %v1325
      %s1342 = smul.u32 16, %s22
      %p1343 = scmp.lt.s32.totalorder %s1342, 63
      %s1344 = scalar_select %p1343, %s1342, 63
      %s1345 = smul.addr %s1344, 8
      %s1346 = scalar_lea.vmem %s11, %s1345
      // Predicated region
      $region65: #{node_embedding_forward.1} parent=63 // pred_check
        %p1347 = pneg %p276
      $region66: #{node_embedding_forward.1} parent=63 // pred_check_branch
        %1349 = sbr.rel (%p1347) target = $region68
      $region67: #{node_embedding_forward.1} parent=63 // pred_region
        %s1350 = smul.u32 16, %s22
      $region68: #{node_embedding_forward.1} parent=63 // pred_fallthru
        _
    $region64: #{node_embedding_forward.1} parent=5 // pred_fallthru
      _
    %p1351 = scmp.le.s32.totalorder 2, %s17
    // Predicated region
    $region69: #{node_embedding_forward.1} parent=5 // pred_check
      %p1352 = pneg %p1351
    $region70: #{node_embedding_forward.1} parent=5 // pred_check_branch
      %1354 = sbr.rel (%p1352) target = $region72
    $region71: #{node_embedding_forward.1} parent=5 // pred_region
      %s1355 = ssub.s32 %s17, 2
      // Predicated region
      $region73: #{node_embedding_forward.1} parent=71 // pred_check
        %p1356 = pneg %p282
      $region74: #{node_embedding_forward.1} parent=71 // pred_check_branch
        %1358 = sbr.rel (%p1356) target = $region76
      $region75: #{node_embedding_forward.1} parent=71 // pred_region
        %s1359 = smul.u32 16, %s23
        %p1360 = scmp.lt.s32.totalorder %s1359, 63
        %s1361 = scalar_select %p1360, %s1359, 63
        %s1362 = smul.addr %s1361, 8
        %s1363 = scalar_lea.vmem %s11, %s1362
      $region76: #{node_embedding_forward.1} parent=71 // pred_fallthru
        _
    $region72: #{node_embedding_forward.1} parent=5 // pred_fallthru
      _
  $region6: #{node_embedding_forward.1} parent=0 // loop_footer
    %s21 = sadd.s32 1, %s17
  $region7: #{node_embedding_forward.1} parent=0 // loop_footer_branch
    %16 = sbr.rel target = $region3
  $region8: #{node_embedding_forward.1} parent=0 // loop_exit
    _

</llo_original>
